<compile_context>
chip_gen: v6e
topology: v6e:2x2x1
jax: 0.10.0
libtpu: 0.0.40
codegen_flags: <defaults>
</compile_context>

<pallas_src>
import functools
import math

import jax
import jax.numpy as jnp
from jax.experimental import pallas as pl
from jax.experimental.pallas import tpu as pltpu


def _layernorm(x, w, b, eps=1e-5):
    # PyTorch LayerNorm: biased variance over the last dim, all in f32.
    mean = jnp.mean(x, axis=-1, keepdims=True)
    var = jnp.mean((x - mean) ** 2, axis=-1, keepdims=True)
    return (x - mean) * jax.lax.rsqrt(var + eps) * w + b


def encoder_cell_kernel(xq_ref, xkv_ref,
                        wq_ref, bq_ref, wkv_ref, bkv_ref,
                        wo_ref, bo_ref, ln1w_ref, ln1b_ref,
                        w1_ref, b1_ref, w2_ref, b2_ref,
                        ln2w_ref, ln2b_ref,
                        y_ref, att_ref,
                        *, n_heads):
    f32 = jnp.float32
    bf16 = jnp.bfloat16

    xq = xq_ref[0]                       # (TQ, D) f32 — query tile rows
    xkv = xkv_ref[0]                     # (S,  D) f32 — full sequence (keys/values)
    TQ, D = xq.shape
    S = xkv.shape[0]
    H = n_heads
    dh = D // H
    scale = 1.0 / math.sqrt(dh)

    # --- head-batched projections (bf16 MXU, f32 accumulation) --------------
    xq_b = jnp.broadcast_to(xq.astype(bf16), (H, TQ, D))
    xkv_b = jnp.broadcast_to(xkv.astype(bf16), (H, S, D))

    # Q from the query tile only; scale folded into q (cheaper than scaling scores).
    q = jnp.einsum("hqd,hde->hqe", xq_b, wq_ref[...],
                   preferred_element_type=f32) + bq_ref[...]
    q = q * scale                                                   # (H, TQ, dh)

    # fused K/V projection over the full sequence.
    kv = jnp.einsum("hsd,hde->hse", xkv_b, wkv_ref[...],
                    preferred_element_type=f32) + bkv_ref[...]      # (H, S, 2*dh)
    k = kv[:, :, :dh]
    v = kv[:, :, dh:]

    # --- scaled dot-product attention, all heads in one batched contraction --
    scores = jnp.einsum("hqe,hke->hqk", q.astype(bf16), k.astype(bf16),
                        preferred_element_type=f32)                 # (H, TQ, S)
    m = jnp.max(scores, axis=-1, keepdims=True)
    e = jnp.exp(scores - m)                                         # f32 softmax
    att = e * pl.reciprocal(jnp.sum(e, axis=-1, keepdims=True), approx=True)
    att_ref[0] = att                                                # single store, all heads

    ctx = jnp.einsum("hqk,hke->hqe", att.astype(bf16), v.astype(bf16),
                     preferred_element_type=f32)                    # (H, TQ, dh)

    # output projection: per-head partials then reduce over the leading head axis
    attn_parts = jnp.einsum("hqe,hed->hqd", ctx.astype(bf16), wo_ref[...],
                            preferred_element_type=f32)             # (H, TQ, D)
    attn_out = jnp.sum(attn_parts, axis=0) + bo_ref[...]            # (TQ, D)

    # residual + LayerNorm (f32)
    x1 = _layernorm(xq + attn_out, ln1w_ref[...], ln1b_ref[...])

    # --- feed forward (wide 2D bf16 matmuls) ---------------------------------
    h1 = jnp.dot(x1.astype(bf16), w1_ref[...],
                 preferred_element_type=f32) + b1_ref[...]
    h1 = jnp.maximum(h1, 0.0)
    ffn = jnp.dot(h1.astype(bf16), w2_ref[...],
                  preferred_element_type=f32) + b2_ref[...]

    # residual + LayerNorm (f32)
    y_ref[0] = _layernorm(x1 + ffn, ln2w_ref[...], ln2b_ref[...])


def _vmem_limit_bytes(S, tq, D, F, n_heads):
    dh = D // n_heads
    bf, f4 = 2, 4
    weights = (n_heads * D * dh + n_heads * D * 2 * dh + n_heads * dh * D
               + D * F + F * D) * bf
    vectors = (n_heads * 3 * dh + 6 * D + F) * f4
    io_blocks = (tq * D + S * D + tq * D + n_heads * tq * S) * f4
    live = (n_heads * (tq + S) * D) * bf \
        + (n_heads * (tq + 2 * S) * dh + 3 * n_heads * tq * S
           + tq * F + 4 * tq * D) * f4
    # 2x for pipeline double-buffering of inputs/outputs + headroom for temporaries.
    return int(min(2 * (weights + vectors + io_blocks) + live + (16 << 20), 96 << 20))


def encoder_cell(x, p, n_heads, *, tq=None):
    B, S, D = x.shape
    F = p["w1"].shape[1]
    dh = D // n_heads
    if tq is None:
        tq = min(S, 128)
    assert S % tq == 0, "sequence length must be divisible by the query tile"
    n_qt = S // tq

    def _full(shape):
        return pl.BlockSpec(shape, lambda b, t: tuple(0 for _ in shape))

    in_specs = [
        pl.BlockSpec((1, tq, D), lambda b, t: (b, t, 0)),      # x  (query tile)
        pl.BlockSpec((1, S, D), lambda b, t: (b, 0, 0)),       # x  (full seq for K/V)
        _full((n_heads, D, dh)), _full((n_heads, 1, dh)),      # wq, bq  (head-major)
        _full((n_heads, D, 2 * dh)), _full((n_heads, 1, 2 * dh)),  # fused wkv, bkv
        _full((n_heads, dh, D)), _full((1, D)),                # wo (head-major), bo
        _full((1, D)), _full((1, D)),                          # ln1 w, b
        _full((D, F)), _full((1, F)),                          # ffn w1, b1
        _full((F, D)), _full((1, D)),                          # ffn w2, b2
        _full((1, D)), _full((1, D)),                          # ln2 w, b
    ]
    out_specs = (
        pl.BlockSpec((1, tq, D), lambda b, t: (b, t, 0)),
        pl.BlockSpec((1, n_heads, tq, S), lambda b, t: (b, 0, t, 0)),
    )
    out_shape = (
        jax.ShapeDtypeStruct((B, S, D), jnp.float32),
        jax.ShapeDtypeStruct((B, n_heads, S, S), jnp.float32),
    )

    kernel = functools.partial(encoder_cell_kernel, n_heads=n_heads)
    y, att = pl.pallas_call(
        kernel,
        out_shape=out_shape,
        grid_spec=pltpu.PrefetchScalarGridSpec(
            num_scalar_prefetch=0,
            grid=(B, n_qt),
            in_specs=in_specs,
            out_specs=out_specs,
        ),
        compiler_params=pltpu.CompilerParams(
            dimension_semantics=("parallel", "parallel"),
            vmem_limit_bytes=_vmem_limit_bytes(S, tq, D, F, n_heads)),
    )(x, x,
      p["wq"], p["bq"], p["wkv"], p["bkv"], p["wo"], p["bo"],
      p["ln1w"], p["ln1b"], p["w1"], p["b1"], p["w2"], p["b2"],
      p["ln2w"], p["ln2b"])
    return y, att


def transformer_encoder(x, packed_params, n_heads):
    atts = []
    for p in packed_params:
        x, att = encoder_cell(x, p, n_heads)
        atts.append(att)
    return x, atts


# ---------------- host-side weight packing (layout, dtype) ----------------
def pack_layer_params(p, n_heads):
    """Re-pack reference (flat, f32) weights into head-major bf16 operands."""
    D = p["wq"].shape[0]
    dh = D // n_heads
    bf16 = jnp.bfloat16

    def per_head_w(w):       # (D, D) -> (H, D, dh)
        return jnp.transpose(w.reshape(D, n_heads, dh), (1, 0, 2))

    def per_head_b(b):       # (1, D) -> (H, 1, dh)
        return jnp.transpose(b.reshape(1, n_heads, dh), (1, 0, 2))

    wkv = jnp.concatenate([per_head_w(p["wk"]), per_head_w(p["wv"])], axis=-1)
    bkv = jnp.concatenate([per_head_b(p["bk"]), per_head_b(p["bv"])], axis=-1)
    return {
        "wq": per_head_w(p["wq"]).astype(bf16),
        "bq": per_head_b(p["bq"]),
        "wkv": wkv.astype(bf16),
        "bkv": bkv,
        "wo": p["wo"].reshape(n_heads, dh, D).astype(bf16),
        "bo": p["bo"],
        "ln1w": p["ln1w"], "ln1b": p["ln1b"],
        "w1": p["w1"].astype(bf16), "b1": p["b1"],
        "w2": p["w2"].astype(bf16), "b2": p["b2"],
        "ln2w": p["ln2w"], "ln2b": p["ln2b"],
    }


# ---------------- pure-JAX reference (for correctness check) -------------
def reference_cell(x, p, n_heads):
    B, S, D = x.shape
    dh = D // n_heads
    q = x @ p["wq"] + p["bq"]
    k = x @ p["wk"] + p["bk"]
    v = x @ p["wv"] + p["bv"]
    q = q.reshape(B, S, n_heads, dh).transpose(0, 2, 1, 3)
    k = k.reshape(B, S, n_heads, dh).transpose(0, 2, 1, 3)
    v = v.reshape(B, S, n_heads, dh).transpose(0, 2, 1, 3)
    scores = jnp.einsum("bhqd,bhkd->bhqk", q, k) / math.sqrt(dh)
    att = jax.nn.softmax(scores, axis=-1)
    ctx = jnp.einsum("bhqk,bhkd->bhqd", att, v).transpose(0, 2, 1, 3).reshape(B, S, D)
    attn_out = ctx @ p["wo"] + p["bo"]
    x = _layernorm(x + attn_out, p["ln1w"], p["ln1b"])
    h1 = jnp.maximum(x @ p["w1"] + p["b1"], 0.0)
    ffn = h1 @ p["w2"] + p["b2"]
    x = _layernorm(x + ffn, p["ln2w"], p["ln2b"])
    return x, att


def reference_encoder(x, params, n_heads):
    atts = []
    for p in params:
        x, att = reference_cell(x, p, n_heads)
        atts.append(att)
    return x, atts


def make_params(key, n_layers, dim, ffn_dim):
    params = []
    for _ in range(n_layers):
        key, *sub = jax.random.split(key, 12)
        s = 0.02
        p = {
            "wq": s * jax.random.normal(sub[0], (dim, dim), jnp.float32),
            "bq": jnp.zeros((1, dim), jnp.float32),
            "wk": s * jax.random.normal(sub[1], (dim, dim), jnp.float32),
            "bk": jnp.zeros((1, dim), jnp.float32),
            "wv": s * jax.random.normal(sub[2], (dim, dim), jnp.float32),
            "bv": jnp.zeros((1, dim), jnp.float32),
            "wo": s * jax.random.normal(sub[3], (dim, dim), jnp.float32),
            "bo": 0.01 * jax.random.normal(sub[4], (1, dim), jnp.float32),
            "ln1w": jnp.ones((1, dim), jnp.float32),
            "ln1b": jnp.zeros((1, dim), jnp.float32),
            "w1": s * jax.random.normal(sub[5], (dim, ffn_dim), jnp.float32),
            "b1": 0.01 * jax.random.normal(sub[6], (1, ffn_dim), jnp.float32),
            "w2": s * jax.random.normal(sub[7], (ffn_dim, dim), jnp.float32),
            "b2": 0.01 * jax.random.normal(sub[8], (1, dim), jnp.float32),
            "ln2w": jnp.ones((1, dim), jnp.float32),
            "ln2b": jnp.zeros((1, dim), jnp.float32),
        }
        params.append(p)
    return params


if __name__ == "__main__":
    B, S, D = 2, 8, 32          # batch, seq, model dim
    n_heads = 4
    n_layers = 2
    ffn_dim = 64

    key = jax.random.PRNGKey(0)
    kx, kp = jax.random.split(key)
    x = jax.random.normal(kx, (B, S, D), jnp.float32)
    params = make_params(kp, n_layers, D, ffn_dim)
    packed = [pack_layer_params(p, n_heads) for p in params]

    y, atts = transformer_encoder(x, packed, n_heads)
    y = jax.block_until_ready(y)
    atts = [jax.block_until_ready(a) for a in atts]

    # correctness check against a pure-JAX f32 reference (kernel uses bf16 MXU
    # inputs with f32 accumulation, so tolerance is loosened accordingly).
    y_ref, atts_ref = reference_encoder(x, params, n_heads)
    assert jnp.allclose(y, y_ref, atol=2e-2, rtol=2e-2)
    for a, ar in zip(atts, atts_ref):
        assert jnp.allclose(a, ar, atol=2e-2, rtol=2e-2)

    print("KERNEL_OK")
</pallas_src>

<mosaic_0001>
module attributes {stable_mosaic.version = 11 : i64} {
  func.func @encoder_cell_kernel(%arg0: i32, %arg1: i32, %arg2: memref<1x8x32xf32, #tpu.memory_space<vmem>>, %arg3: memref<1x8x32xf32, #tpu.memory_space<vmem>>, %arg4: memref<4x32x8xbf16, #tpu.memory_space<vmem>>, %arg5: memref<4x1x8xf32, #tpu.memory_space<vmem>>, %arg6: memref<4x32x16xbf16, #tpu.memory_space<vmem>>, %arg7: memref<4x1x16xf32, #tpu.memory_space<vmem>>, %arg8: memref<4x8x32xbf16, #tpu.memory_space<vmem>>, %arg9: memref<1x32xf32, #tpu.memory_space<vmem>>, %arg10: memref<1x32xf32, #tpu.memory_space<vmem>>, %arg11: memref<1x32xf32, #tpu.memory_space<vmem>>, %arg12: memref<32x64xbf16, #tpu.memory_space<vmem>>, %arg13: memref<1x64xf32, #tpu.memory_space<vmem>>, %arg14: memref<64x32xbf16, #tpu.memory_space<vmem>>, %arg15: memref<1x32xf32, #tpu.memory_space<vmem>>, %arg16: memref<1x32xf32, #tpu.memory_space<vmem>>, %arg17: memref<1x32xf32, #tpu.memory_space<vmem>>, %arg18: memref<1x8x32xf32, #tpu.memory_space<vmem>>, %arg19: memref<1x4x8x8xf32, #tpu.memory_space<vmem>>) attributes {dimension_semantics = [#tpu.dimension_semantics<parallel>, #tpu.dimension_semantics<parallel>], iteration_bounds = array<i64: 2, 1>, scalar_prefetch = 0 : i64, scratch_operands = 0 : i64, tpu.core_type = #tpu.core_type<tc>, window_params = [{transform_indices = @transform_0, window_bounds = array<i64: 1, 8, 32>}, {transform_indices = @transform_1, window_bounds = array<i64: 1, 8, 32>}, {pipeline_mode = #tpu.pipeline_mode<synchronous>, transform_indices = @transform_2, window_bounds = array<i64: 4, 32, 8>}, {pipeline_mode = #tpu.pipeline_mode<synchronous>, transform_indices = @transform_3, window_bounds = array<i64: 4, 1, 8>}, {pipeline_mode = #tpu.pipeline_mode<synchronous>, transform_indices = @transform_4, window_bounds = array<i64: 4, 32, 16>}, {pipeline_mode = #tpu.pipeline_mode<synchronous>, transform_indices = @transform_5, window_bounds = array<i64: 4, 1, 16>}, {pipeline_mode = #tpu.pipeline_mode<synchronous>, transform_indices = @transform_6, window_bounds = array<i64: 4, 8, 32>}, {pipeline_mode = #tpu.pipeline_mode<synchronous>, transform_indices = @transform_7, window_bounds = array<i64: 1, 32>}, {pipeline_mode = #tpu.pipeline_mode<synchronous>, transform_indices = @transform_8, window_bounds = array<i64: 1, 32>}, {pipeline_mode = #tpu.pipeline_mode<synchronous>, transform_indices = @transform_9, window_bounds = array<i64: 1, 32>}, {pipeline_mode = #tpu.pipeline_mode<synchronous>, transform_indices = @transform_10, window_bounds = array<i64: 32, 64>}, {pipeline_mode = #tpu.pipeline_mode<synchronous>, transform_indices = @transform_11, window_bounds = array<i64: 1, 64>}, {pipeline_mode = #tpu.pipeline_mode<synchronous>, transform_indices = @transform_12, window_bounds = array<i64: 64, 32>}, {pipeline_mode = #tpu.pipeline_mode<synchronous>, transform_indices = @transform_13, window_bounds = array<i64: 1, 32>}, {pipeline_mode = #tpu.pipeline_mode<synchronous>, transform_indices = @transform_14, window_bounds = array<i64: 1, 32>}, {pipeline_mode = #tpu.pipeline_mode<synchronous>, transform_indices = @transform_15, window_bounds = array<i64: 1, 32>}, {transform_indices = @transform_16, window_bounds = array<i64: 1, 8, 32>}, {transform_indices = @transform_17, window_bounds = array<i64: 1, 4, 8, 8>}]} {
    %c0 = arith.constant 0 : index
    %c0_0 = arith.constant 0 : index
    %c0_1 = arith.constant 0 : index
    %0 = vector.load %arg2[%c0, %c0_0, %c0_1] : memref<1x8x32xf32, #tpu.memory_space<vmem>>, vector<1x8x32xf32>
    %1 = vector.shape_cast %0 : vector<1x8x32xf32> to vector<8x32xf32>
    %c0_2 = arith.constant 0 : index
    %c0_3 = arith.constant 0 : index
    %c0_4 = arith.constant 0 : index
    %2 = vector.load %arg3[%c0_2, %c0_3, %c0_4] : memref<1x8x32xf32, #tpu.memory_space<vmem>>, vector<1x8x32xf32>
    %3 = vector.shape_cast %2 : vector<1x8x32xf32> to vector<8x32xf32>
    %4 = arith.truncf %1 : vector<8x32xf32> to vector<8x32xbf16>
    %5 = vector.shape_cast %4 : vector<8x32xbf16> to vector<1x8x32xbf16>
    %6 = vector.broadcast %5 : vector<1x8x32xbf16> to vector<4x8x32xbf16>
    %7 = arith.truncf %3 : vector<8x32xf32> to vector<8x32xbf16>
    %8 = vector.shape_cast %7 : vector<8x32xbf16> to vector<1x8x32xbf16>
    %9 = vector.broadcast %8 : vector<1x8x32xbf16> to vector<4x8x32xbf16>
    %c0_5 = arith.constant 0 : index
    %c0_6 = arith.constant 0 : index
    %c0_7 = arith.constant 0 : index
    %10 = vector.load %arg4[%c0_5, %c0_6, %c0_7] : memref<4x32x8xbf16, #tpu.memory_space<vmem>>, vector<4x32x8xbf16>
    "tpu.trace_start"() <{level = 10 : i32, message = "hqd,hde->hqe"}> : () -> ()
    %cst = arith.constant dense<0.000000e+00> : vector<4x8x8xf32>
    %11 = tpu.matmul %6, %10, %cst {dimension_numbers = #tpu.dot_dimension_numbers<[2], [1], [1], [2], [0, 0, 0, 1, 1, 2], [0], [0]>} : vector<4x8x32xbf16>, vector<4x32x8xbf16>, vector<4x8x8xf32> -> vector<4x8x8xf32>
    "tpu.trace_stop"() : () -> ()
    %c0_8 = arith.constant 0 : index
    %c0_9 = arith.constant 0 : index
    %c0_10 = arith.constant 0 : index
    %12 = vector.load %arg5[%c0_8, %c0_9, %c0_10] : memref<4x1x8xf32, #tpu.memory_space<vmem>>, vector<4x1x8xf32>
    %13 = vector.broadcast %12 : vector<4x1x8xf32> to vector<4x8x8xf32>
    %14 = arith.addf %11, %13 : vector<4x8x8xf32>
    %cst_11 = arith.constant 0.353553385 : f32
    %15 = vector.broadcast %cst_11 : f32 to vector<4x8x8xf32>
    %16 = arith.mulf %14, %15 : vector<4x8x8xf32>
    %c0_12 = arith.constant 0 : index
    %c0_13 = arith.constant 0 : index
    %c0_14 = arith.constant 0 : index
    %17 = vector.load %arg6[%c0_12, %c0_13, %c0_14] : memref<4x32x16xbf16, #tpu.memory_space<vmem>>, vector<4x32x16xbf16>
    "tpu.trace_start"() <{level = 10 : i32, message = "hsd,hde->hse"}> : () -> ()
    %cst_15 = arith.constant dense<0.000000e+00> : vector<4x8x16xf32>
    %18 = tpu.matmul %9, %17, %cst_15 {dimension_numbers = #tpu.dot_dimension_numbers<[2], [1], [1], [2], [0, 0, 0, 1, 1, 2], [0], [0]>} : vector<4x8x32xbf16>, vector<4x32x16xbf16>, vector<4x8x16xf32> -> vector<4x8x16xf32>
    "tpu.trace_stop"() : () -> ()
    %c0_16 = arith.constant 0 : index
    %c0_17 = arith.constant 0 : index
    %c0_18 = arith.constant 0 : index
    %19 = vector.load %arg7[%c0_16, %c0_17, %c0_18] : memref<4x1x16xf32, #tpu.memory_space<vmem>>, vector<4x1x16xf32>
    %20 = vector.broadcast %19 : vector<4x1x16xf32> to vector<4x8x16xf32>
    %21 = arith.addf %18, %20 : vector<4x8x16xf32>
    %22 = vector.extract_strided_slice %21 {offsets = [0, 0, 0], sizes = [4, 8, 8], strides = [1, 1, 1]} : vector<4x8x16xf32> to vector<4x8x8xf32>
    %23 = vector.extract_strided_slice %21 {offsets = [0, 0, 8], sizes = [4, 8, 8], strides = [1, 1, 1]} : vector<4x8x16xf32> to vector<4x8x8xf32>
    %24 = arith.truncf %16 : vector<4x8x8xf32> to vector<4x8x8xbf16>
    %25 = arith.truncf %22 : vector<4x8x8xf32> to vector<4x8x8xbf16>
    "tpu.trace_start"() <{level = 10 : i32, message = "hqe,hke->hqk"}> : () -> ()
    %cst_19 = arith.constant dense<0.000000e+00> : vector<4x8x8xf32>
    %26 = tpu.matmul %24, %25, %cst_19 {dimension_numbers = #tpu.dot_dimension_numbers<[2], [2], [1], [1], [0, 0, 0, 1, 1, 1], [0], [0]>} : vector<4x8x8xbf16>, vector<4x8x8xbf16>, vector<4x8x8xf32> -> vector<4x8x8xf32>
    "tpu.trace_stop"() : () -> ()
    %cst_20 = arith.constant dense<0xFF800000> : vector<4x8xf32>
    %27 = vector.multi_reduction <maximumf>, %26, %cst_20 [2] : vector<4x8x8xf32> to vector<4x8xf32>
    %28 = vector.shape_cast %27 : vector<4x8xf32> to vector<4x8x1xf32>
    %29 = vector.broadcast %28 : vector<4x8x1xf32> to vector<4x8x8xf32>
    %30 = arith.subf %26, %29 : vector<4x8x8xf32>
    %31 = math.exp %30 : vector<4x8x8xf32>
    %cst_21 = arith.constant dense<0.000000e+00> : vector<4x8xf32>
    %32 = vector.multi_reduction <add>, %31, %cst_21 [2] : vector<4x8x8xf32> to vector<4x8xf32>
    %33 = vector.shape_cast %32 : vector<4x8xf32> to vector<4x8x1xf32>
    %34 = tpu.reciprocal %33 {approx = true} : vector<4x8x1xf32> -> vector<4x8x1xf32>
    %35 = vector.broadcast %34 : vector<4x8x1xf32> to vector<4x8x8xf32>
    %36 = arith.mulf %31, %35 : vector<4x8x8xf32>
    %c0_22 = arith.constant 0 : index
    %c0_23 = arith.constant 0 : index
    %c0_24 = arith.constant 0 : index
    %c0_25 = arith.constant 0 : index
    %37 = vector.load %arg19[%c0_22, %c0_23, %c0_24, %c0_25] : memref<1x4x8x8xf32, #tpu.memory_space<vmem>>, vector<1x4x8x8xf32>
    %38 = vector.shape_cast %37 : vector<1x4x8x8xf32> to vector<4x8x8xf32>
    %39 = vector.shape_cast %36 : vector<4x8x8xf32> to vector<1x4x8x8xf32>
    tpu.vector_store %arg19[%c0_22, %c0_23, %c0_24, %c0_25], %39 {strides = array<i32>} : memref<1x4x8x8xf32, #tpu.memory_space<vmem>>, vector<1x4x8x8xf32>,
    %40 = arith.truncf %36 : vector<4x8x8xf32> to vector<4x8x8xbf16>
    %41 = arith.truncf %23 : vector<4x8x8xf32> to vector<4x8x8xbf16>
    "tpu.trace_start"() <{level = 10 : i32, message = "hqk,hke->hqe"}> : () -> ()
    %cst_26 = arith.constant dense<0.000000e+00> : vector<4x8x8xf32>
    %42 = tpu.matmul %40, %41, %cst_26 {dimension_numbers = #tpu.dot_dimension_numbers<[2], [1], [1], [2], [0, 0, 0, 1, 1, 2], [0], [0]>} : vector<4x8x8xbf16>, vector<4x8x8xbf16>, vector<4x8x8xf32> -> vector<4x8x8xf32>
    "tpu.trace_stop"() : () -> ()
    %43 = arith.truncf %42 : vector<4x8x8xf32> to vector<4x8x8xbf16>
    %c0_27 = arith.constant 0 : index
    %c0_28 = arith.constant 0 : index
    %c0_29 = arith.constant 0 : index
    %44 = vector.load %arg8[%c0_27, %c0_28, %c0_29] : memref<4x8x32xbf16, #tpu.memory_space<vmem>>, vector<4x8x32xbf16>
    "tpu.trace_start"() <{level = 10 : i32, message = "hqe,hed->hqd"}> : () -> ()
    %cst_30 = arith.constant dense<0.000000e+00> : vector<4x8x32xf32>
    %45 = tpu.matmul %43, %44, %cst_30 {dimension_numbers = #tpu.dot_dimension_numbers<[2], [1], [1], [2], [0, 0, 0, 1, 1, 2], [0], [0]>} : vector<4x8x8xbf16>, vector<4x8x32xbf16>, vector<4x8x32xf32> -> vector<4x8x32xf32>
    "tpu.trace_stop"() : () -> ()
    %cst_31 = arith.constant dense<0.000000e+00> : vector<8x32xf32>
    %46 = vector.multi_reduction <add>, %45, %cst_31 [0] : vector<4x8x32xf32> to vector<8x32xf32>
    %c0_32 = arith.constant 0 : index
    %c0_33 = arith.constant 0 : index
    %47 = vector.load %arg9[%c0_32, %c0_33] : memref<1x32xf32, #tpu.memory_space<vmem>>, vector<1x32xf32>
    %48 = vector.broadcast %47 : vector<1x32xf32> to vector<8x32xf32>
    %49 = arith.addf %46, %48 : vector<8x32xf32>
    %50 = arith.addf %1, %49 : vector<8x32xf32>
    %c0_34 = arith.constant 0 : index
    %c0_35 = arith.constant 0 : index
    %51 = vector.load %arg10[%c0_34, %c0_35] : memref<1x32xf32, #tpu.memory_space<vmem>>, vector<1x32xf32>
    %c0_36 = arith.constant 0 : index
    %c0_37 = arith.constant 0 : index
    %52 = vector.load %arg11[%c0_36, %c0_37] : memref<1x32xf32, #tpu.memory_space<vmem>>, vector<1x32xf32>
    %cst_38 = arith.constant dense<0.000000e+00> : vector<8xf32>
    %53 = vector.multi_reduction <add>, %50, %cst_38 [1] : vector<8x32xf32> to vector<8xf32>
    %54 = vector.shape_cast %53 : vector<8xf32> to vector<8x1xf32>
    %cst_39 = arith.constant 3.200000e+01 : f32
    %55 = vector.broadcast %cst_39 : f32 to vector<8x1xf32>
    %56 = arith.divf %54, %55 : vector<8x1xf32>
    %57 = vector.broadcast %56 : vector<8x1xf32> to vector<8x32xf32>
    %58 = arith.subf %50, %57 : vector<8x32xf32>
    %59 = arith.mulf %58, %58 : vector<8x32xf32>
    %cst_40 = arith.constant dense<0.000000e+00> : vector<8xf32>
    %60 = vector.multi_reduction <add>, %59, %cst_40 [1] : vector<8x32xf32> to vector<8xf32>
    %61 = vector.shape_cast %60 : vector<8xf32> to vector<8x1xf32>
    %cst_41 = arith.constant 3.200000e+01 : f32
    %62 = vector.broadcast %cst_41 : f32 to vector<8x1xf32>
    %63 = arith.divf %61, %62 : vector<8x1xf32>
    %64 = vector.broadcast %56 : vector<8x1xf32> to vector<8x32xf32>
    %65 = arith.subf %50, %64 : vector<8x32xf32>
    %cst_42 = arith.constant 9.99999974E-6 : f32
    %66 = vector.broadcast %cst_42 : f32 to vector<8x1xf32>
    %67 = arith.addf %63, %66 : vector<8x1xf32>
    %68 = math.rsqrt %67 : vector<8x1xf32>
    %69 = vector.broadcast %68 : vector<8x1xf32> to vector<8x32xf32>
    %70 = arith.mulf %65, %69 : vector<8x32xf32>
    %71 = vector.broadcast %51 : vector<1x32xf32> to vector<8x32xf32>
    %72 = arith.mulf %70, %71 : vector<8x32xf32>
    %73 = vector.broadcast %52 : vector<1x32xf32> to vector<8x32xf32>
    %74 = arith.addf %72, %73 : vector<8x32xf32>
    %75 = arith.truncf %74 : vector<8x32xf32> to vector<8x32xbf16>
    %c0_43 = arith.constant 0 : index
    %c0_44 = arith.constant 0 : index
    %76 = vector.load %arg12[%c0_43, %c0_44] : memref<32x64xbf16, #tpu.memory_space<vmem>>, vector<32x64xbf16>
    %cst_45 = arith.constant dense<0.000000e+00> : vector<8x64xf32>
    %77 = tpu.matmul %75, %76, %cst_45 {dimension_numbers = #tpu.dot_dimension_numbers<[1], [0], [0], [1], [0, 0, 1, 1], [], []>} : vector<8x32xbf16>, vector<32x64xbf16>, vector<8x64xf32> -> vector<8x64xf32>
    %c0_46 = arith.constant 0 : index
    %c0_47 = arith.constant 0 : index
    %78 = vector.load %arg13[%c0_46, %c0_47] : memref<1x64xf32, #tpu.memory_space<vmem>>, vector<1x64xf32>
    %79 = vector.broadcast %78 : vector<1x64xf32> to vector<8x64xf32>
    %80 = arith.addf %77, %79 : vector<8x64xf32>
    %cst_48 = arith.constant 0.000000e+00 : f32
    %81 = vector.broadcast %cst_48 : f32 to vector<8x64xf32>
    %82 = arith.maximumf %80, %81 : vector<8x64xf32>
    %83 = arith.truncf %82 : vector<8x64xf32> to vector<8x64xbf16>
    %c0_49 = arith.constant 0 : index
    %c0_50 = arith.constant 0 : index
    %84 = vector.load %arg14[%c0_49, %c0_50] : memref<64x32xbf16, #tpu.memory_space<vmem>>, vector<64x32xbf16>
    %cst_51 = arith.constant dense<0.000000e+00> : vector<8x32xf32>
    %85 = tpu.matmul %83, %84, %cst_51 {dimension_numbers = #tpu.dot_dimension_numbers<[1], [0], [0], [1], [0, 0, 1, 1], [], []>} : vector<8x64xbf16>, vector<64x32xbf16>, vector<8x32xf32> -> vector<8x32xf32>
    %c0_52 = arith.constant 0 : index
    %c0_53 = arith.constant 0 : index
    %86 = vector.load %arg15[%c0_52, %c0_53] : memref<1x32xf32, #tpu.memory_space<vmem>>, vector<1x32xf32>
    %87 = vector.broadcast %86 : vector<1x32xf32> to vector<8x32xf32>
    %88 = arith.addf %85, %87 : vector<8x32xf32>
    %89 = arith.addf %74, %88 : vector<8x32xf32>
    %c0_54 = arith.constant 0 : index
    %c0_55 = arith.constant 0 : index
    %90 = vector.load %arg16[%c0_54, %c0_55] : memref<1x32xf32, #tpu.memory_space<vmem>>, vector<1x32xf32>
    %c0_56 = arith.constant 0 : index
    %c0_57 = arith.constant 0 : index
    %91 = vector.load %arg17[%c0_56, %c0_57] : memref<1x32xf32, #tpu.memory_space<vmem>>, vector<1x32xf32>
    %cst_58 = arith.constant dense<0.000000e+00> : vector<8xf32>
    %92 = vector.multi_reduction <add>, %89, %cst_58 [1] : vector<8x32xf32> to vector<8xf32>
    %93 = vector.shape_cast %92 : vector<8xf32> to vector<8x1xf32>
    %cst_59 = arith.constant 3.200000e+01 : f32
    %94 = vector.broadcast %cst_59 : f32 to vector<8x1xf32>
    %95 = arith.divf %93, %94 : vector<8x1xf32>
    %96 = vector.broadcast %95 : vector<8x1xf32> to vector<8x32xf32>
    %97 = arith.subf %89, %96 : vector<8x32xf32>
    %98 = arith.mulf %97, %97 : vector<8x32xf32>
    %cst_60 = arith.constant dense<0.000000e+00> : vector<8xf32>
    %99 = vector.multi_reduction <add>, %98, %cst_60 [1] : vector<8x32xf32> to vector<8xf32>
    %100 = vector.shape_cast %99 : vector<8xf32> to vector<8x1xf32>
    %cst_61 = arith.constant 3.200000e+01 : f32
    %101 = vector.broadcast %cst_61 : f32 to vector<8x1xf32>
    %102 = arith.divf %100, %101 : vector<8x1xf32>
    %103 = vector.broadcast %95 : vector<8x1xf32> to vector<8x32xf32>
    %104 = arith.subf %89, %103 : vector<8x32xf32>
    %cst_62 = arith.constant 9.99999974E-6 : f32
    %105 = vector.broadcast %cst_62 : f32 to vector<8x1xf32>
    %106 = arith.addf %102, %105 : vector<8x1xf32>
    %107 = math.rsqrt %106 : vector<8x1xf32>
    %108 = vector.broadcast %107 : vector<8x1xf32> to vector<8x32xf32>
    %109 = arith.mulf %104, %108 : vector<8x32xf32>
    %110 = vector.broadcast %90 : vector<1x32xf32> to vector<8x32xf32>
    %111 = arith.mulf %109, %110 : vector<8x32xf32>
    %112 = vector.broadcast %91 : vector<1x32xf32> to vector<8x32xf32>
    %113 = arith.addf %111, %112 : vector<8x32xf32>
    %c0_63 = arith.constant 0 : index
    %c0_64 = arith.constant 0 : index
    %c0_65 = arith.constant 0 : index
    %114 = vector.load %arg18[%c0_63, %c0_64, %c0_65] : memref<1x8x32xf32, #tpu.memory_space<vmem>>, vector<1x8x32xf32>
    %115 = vector.shape_cast %114 : vector<1x8x32xf32> to vector<8x32xf32>
    %116 = vector.shape_cast %113 : vector<8x32xf32> to vector<1x8x32xf32>
    tpu.vector_store %arg18[%c0_63, %c0_64, %c0_65], %116 {strides = array<i32>} : memref<1x8x32xf32, #tpu.memory_space<vmem>>, vector<1x8x32xf32>,
    return
  }
  func.func @transform_0(%arg0: i32, %arg1: i32) -> (i32, i32, i32) {
    %c0_i32 = arith.constant 0 : i32
    %c0_i32_0 = arith.constant 0 : i32
    return %arg0, %arg1, %c0_i32 : i32, i32, i32
  }
  func.func @transform_1(%arg0: i32, %arg1: i32) -> (i32, i32, i32) {
    %c0_i32 = arith.constant 0 : i32
    %c0_i32_0 = arith.constant 0 : i32
    %c0_i32_1 = arith.constant 0 : i32
    return %arg0, %c0_i32, %c0_i32_0 : i32, i32, i32
  }
  func.func @transform_2(%arg0: i32, %arg1: i32) -> (i32, i32, i32) {
    %c0_i32 = arith.constant 0 : i32
    %c0_i32_0 = arith.constant 0 : i32
    %c0_i32_1 = arith.constant 0 : i32
    %c0_i32_2 = arith.constant 0 : i32
    return %c0_i32, %c0_i32_0, %c0_i32_1 : i32, i32, i32
  }
  func.func @transform_3(%arg0: i32, %arg1: i32) -> (i32, i32, i32) {
    %c0_i32 = arith.constant 0 : i32
    %c0_i32_0 = arith.constant 0 : i32
    %c0_i32_1 = arith.constant 0 : i32
    %c0_i32_2 = arith.constant 0 : i32
    return %c0_i32, %c0_i32_0, %c0_i32_1 : i32, i32, i32
  }
  func.func @transform_4(%arg0: i32, %arg1: i32) -> (i32, i32, i32) {
    %c0_i32 = arith.constant 0 : i32
    %c0_i32_0 = arith.constant 0 : i32
    %c0_i32_1 = arith.constant 0 : i32
    %c0_i32_2 = arith.constant 0 : i32
    return %c0_i32, %c0_i32_0, %c0_i32_1 : i32, i32, i32
  }
  func.func @transform_5(%arg0: i32, %arg1: i32) -> (i32, i32, i32) {
    %c0_i32 = arith.constant 0 : i32
    %c0_i32_0 = arith.constant 0 : i32
    %c0_i32_1 = arith.constant 0 : i32
    %c0_i32_2 = arith.constant 0 : i32
    return %c0_i32, %c0_i32_0, %c0_i32_1 : i32, i32, i32
  }
  func.func @transform_6(%arg0: i32, %arg1: i32) -> (i32, i32, i32) {
    %c0_i32 = arith.constant 0 : i32
    %c0_i32_0 = arith.constant 0 : i32
    %c0_i32_1 = arith.constant 0 : i32
    %c0_i32_2 = arith.constant 0 : i32
    return %c0_i32, %c0_i32_0, %c0_i32_1 : i32, i32, i32
  }
  func.func @transform_7(%arg0: i32, %arg1: i32) -> (i32, i32) {
    %c0_i32 = arith.constant 0 : i32
    %c0_i32_0 = arith.constant 0 : i32
    %c0_i32_1 = arith.constant 0 : i32
    return %c0_i32, %c0_i32_0 : i32, i32
  }
  func.func @transform_8(%arg0: i32, %arg1: i32) -> (i32, i32) {
    %c0_i32 = arith.constant 0 : i32
    %c0_i32_0 = arith.constant 0 : i32
    %c0_i32_1 = arith.constant 0 : i32
    return %c0_i32, %c0_i32_0 : i32, i32
  }
  func.func @transform_9(%arg0: i32, %arg1: i32) -> (i32, i32) {
    %c0_i32 = arith.constant 0 : i32
    %c0_i32_0 = arith.constant 0 : i32
    %c0_i32_1 = arith.constant 0 : i32
    return %c0_i32, %c0_i32_0 : i32, i32
  }
  func.func @transform_10(%arg0: i32, %arg1: i32) -> (i32, i32) {
    %c0_i32 = arith.constant 0 : i32
    %c0_i32_0 = arith.constant 0 : i32
    %c0_i32_1 = arith.constant 0 : i32
    return %c0_i32, %c0_i32_0 : i32, i32
  }
  func.func @transform_11(%arg0: i32, %arg1: i32) -> (i32, i32) {
    %c0_i32 = arith.constant 0 : i32
    %c0_i32_0 = arith.constant 0 : i32
    %c0_i32_1 = arith.constant 0 : i32
    return %c0_i32, %c0_i32_0 : i32, i32
  }
  func.func @transform_12(%arg0: i32, %arg1: i32) -> (i32, i32) {
    %c0_i32 = arith.constant 0 : i32
    %c0_i32_0 = arith.constant 0 : i32
    %c0_i32_1 = arith.constant 0 : i32
    return %c0_i32, %c0_i32_0 : i32, i32
  }
  func.func @transform_13(%arg0: i32, %arg1: i32) -> (i32, i32) {
    %c0_i32 = arith.constant 0 : i32
    %c0_i32_0 = arith.constant 0 : i32
    %c0_i32_1 = arith.constant 0 : i32
    return %c0_i32, %c0_i32_0 : i32, i32
  }
  func.func @transform_14(%arg0: i32, %arg1: i32) -> (i32, i32) {
    %c0_i32 = arith.constant 0 : i32
    %c0_i32_0 = arith.constant 0 : i32
    %c0_i32_1 = arith.constant 0 : i32
    return %c0_i32, %c0_i32_0 : i32, i32
  }
  func.func @transform_15(%arg0: i32, %arg1: i32) -> (i32, i32) {
    %c0_i32 = arith.constant 0 : i32
    %c0_i32_0 = arith.constant 0 : i32
    %c0_i32_1 = arith.constant 0 : i32
    return %c0_i32, %c0_i32_0 : i32, i32
  }
  func.func @transform_16(%arg0: i32, %arg1: i32) -> (i32, i32, i32) {
    %c0_i32 = arith.constant 0 : i32
    %c0_i32_0 = arith.constant 0 : i32
    return %arg0, %arg1, %c0_i32 : i32, i32, i32
  }
  func.func @transform_17(%arg0: i32, %arg1: i32) -> (i32, i32, i32, i32) {
    %c0_i32 = arith.constant 0 : i32
    %c0_i32_0 = arith.constant 0 : i32
    %c0_i32_1 = arith.constant 0 : i32
    return %arg0, %c0_i32, %arg1, %c0_i32_0 : i32, i32, i32, i32
  }
}

</mosaic_0001>

<llo_original>
// kernel: tpu_custom_call.1
$region0: #{tpu_custom_call.1}
  #allocation0 [shape = 'u32[]', space=smem, size = 0x4, offset = 0x4, fixed_abs, tag = 'smem constant byte address 0x4 - core index']
  #allocation1 [shape = 'u32[144,128]{1,0:T(1,128)}', space=vmem, size = 0x12000, scoped, tag = 'internal scratch']
  %s0 = inlined_call_operand.vmem [shape: f32[2,8,32], index: 0, kind: input, shape index: {}]
  %s1 = inlined_call_operand.vmem [shape: f32[2,8,32], index: 1, kind: input, shape index: {}]
  %s2 = inlined_call_operand.vmem [shape: bf16[4,32,8], index: 2, kind: input, shape index: {}]
  %s3 = inlined_call_operand.vmem [shape: f32[4,1,8], index: 3, kind: input, shape index: {}]
  %s4 = inlined_call_operand.vmem [shape: bf16[4,32,16], index: 4, kind: input, shape index: {}]
  %s5 = inlined_call_operand.vmem [shape: f32[4,1,16], index: 5, kind: input, shape index: {}]
  %s6 = inlined_call_operand.vmem [shape: bf16[4,8,32], index: 6, kind: input, shape index: {}]
  %s7 = inlined_call_operand.vmem [shape: f32[1,32], index: 7, kind: input, shape index: {}]
  %s8 = inlined_call_operand.vmem [shape: f32[1,32], index: 8, kind: input, shape index: {}]
  %s9 = inlined_call_operand.vmem [shape: f32[1,32], index: 9, kind: input, shape index: {}]
  %s10 = inlined_call_operand.vmem [shape: bf16[32,64], index: 10, kind: input, shape index: {}]
  %s11 = inlined_call_operand.vmem [shape: f32[1,64], index: 11, kind: input, shape index: {}]
  %s12 = inlined_call_operand.vmem [shape: bf16[64,32], index: 12, kind: input, shape index: {}]
  %s13 = inlined_call_operand.vmem [shape: f32[1,32], index: 13, kind: input, shape index: {}]
  %s14 = inlined_call_operand.vmem [shape: f32[1,32], index: 14, kind: input, shape index: {}]
  %s15 = inlined_call_operand.vmem [shape: f32[1,32], index: 15, kind: input, shape index: {}]
  %s16 = inlined_call_operand.hbm [shape: f32[2,8,32], index: 16, kind: output, shape index: {0}]
  %s17 = inlined_call_operand.hbm [shape: f32[2,4,8,8], index: 17, kind: output, shape index: {1}]
  %18 = xla_tuple %s16, %s17
  %s19 = sld [smem:[#allocation0]]
  $region105: #{tpu_custom_call.1} parent=0
    _
  %s21 = ssub.s32 1, %s19
  %s22 = scalar_select 0, %s21, %s19
  $region1: #{tpu_custom_call.1} parent=0
    #allocation2 [shape = 'u8[8192]{0}', space=vmem, size = 0x2000, scoped, tag = 'output window, operand 0']
    #allocation3 [shape = 's32[2]{0}', space=sflag, size = 0x8, scoped, tag = 'scoped memory for tpu_custom_call.1']
    #allocation4 [shape = 'u8[32768]{0}', space=vmem, size = 0x8000, scoped, tag = 'output window, operand 1']
    #allocation5 [shape = 's32[2]{0}', space=sflag, size = 0x8, scoped, tag = 'scoped memory for tpu_custom_call.1']
    %23 = vsyncpa [#allocation3], 0
    %s24 = scalar_lea.sflag [#allocation3], 1
    %25 = vsyncpa %s24, 0
    %26 = vsyncpa [#allocation5], 0
    %s27 = scalar_lea.sflag [#allocation5], 1
    %28 = vsyncpa %s27, 0
    loop: start=0, step=1, limit=4
    $region2: #{tpu_custom_call.1} parent=1 // loop_pre_header
      _
    $region3: #{tpu_custom_call.1} parent=1 // loop_header
      %s30 = sphi 0, %s34
      %p31 = scmp.ge.s32.totalorder %s30, 4
      %s37 = sphi 0, %s49
      %s38 = sphi 0, %s45
      %s39 = sphi 0, %s37
      %s40 = sphi 0, %s38
      %s41 = sphi 0, %s39
      %s42 = sphi 0, %s40
      %s54 = sphi 0, %s56
      %s57 = sphi 0, %s54
      %s58 = sphi 0, %s57
      %s74 = sphi 0, %s58
      %s80 = sphi 0, %s82
      %s83 = sphi 0, %s80
      %s84 = sphi 0, %s83
      %s100 = sphi 0, %s84
      %s104 = sphi 0, %s104
      %s106 = sphi 0, %s104
      %s107 = sphi 0, %s106
      %s121 = sphi 0, %s107
      %s125 = sphi 0, %s125
      %s127 = sphi 0, %s125
      %s128 = sphi 0, %s127
      %s142 = sphi 0, %s128
      %s146 = sphi 0, %s146
      %s148 = sphi 0, %s146
      %s149 = sphi 0, %s148
      %s163 = sphi 0, %s149
      %s167 = sphi 0, %s167
      %s169 = sphi 0, %s167
      %s170 = sphi 0, %s169
      %s184 = sphi 0, %s170
      %s188 = sphi 0, %s188
      %s190 = sphi 0, %s188
      %s191 = sphi 0, %s190
      %s205 = sphi 0, %s191
      %s209 = sphi 0, %s209
      %s211 = sphi 0, %s209
      %s212 = sphi 0, %s211
      %s226 = sphi 0, %s212
      %s230 = sphi 0, %s230
      %s232 = sphi 0, %s230
      %s233 = sphi 0, %s232
      %s247 = sphi 0, %s233
      %s251 = sphi 0, %s251
      %s253 = sphi 0, %s251
      %s254 = sphi 0, %s253
      %s268 = sphi 0, %s254
      %s272 = sphi 0, %s272
      %s274 = sphi 0, %s272
      %s275 = sphi 0, %s274
      %s289 = sphi 0, %s275
      %s293 = sphi 0, %s293
      %s295 = sphi 0, %s293
      %s296 = sphi 0, %s295
      %s310 = sphi 0, %s296
      %s314 = sphi 0, %s314
      %s316 = sphi 0, %s314
      %s317 = sphi 0, %s316
      %s331 = sphi 0, %s317
      %s335 = sphi 0, %s335
      %s337 = sphi 0, %s335
      %s338 = sphi 0, %s337
      %s352 = sphi 0, %s338
      %s356 = sphi 0, %s356
      %s358 = sphi 0, %s356
      %s359 = sphi 0, %s358
      %s373 = sphi 0, %s359
      %s377 = sphi 0, %s377
      %s379 = sphi 0, %s377
      %s380 = sphi 0, %s379
      %s394 = sphi 0, %s380
      %s402 = sphi 0, %s404
      %s405 = sphi 0, %s402
      %s406 = sphi 0, %s405
      %s422 = sphi 0, %s406
      %s430 = sphi 0, %s432
      %s433 = sphi 0, %s430
      %s434 = sphi 0, %s433
      %s450 = sphi 0, %s434
    $region4: #{tpu_custom_call.1} parent=1 // loop_header_branch
      %33 = sbr.rel (%p31) target = $region8
    $region5: #{tpu_custom_call.1} parent=1 // loop_body
      %s35 = ssub.s32 %s30, 1
      %s36 = ssub.s32 %s30, 2
      %s43 = sadd.s32 1, %s38
      %p44 = scmp.ge.s32.totalorder %s43, 1
      %s45 = scalar_select %p44, 0, %s43
      %s46 = sadd.s32 1, %s37
      %s47 = scalar_select %p44, %s46, %s37
      %p48 = scmp.ge.s32.totalorder %s47, 2
      %s49 = scalar_select %p48, 0, %s47
      %s50 = ssub.s32 %s37, %s49
      %s51 = ssub.s32 %s38, %s45
      %s52 = sor.u32 %s50, %s51
      %p53 = scmp.eq.s32.totalorder %s52, 0
      %s55 = sadd.s32 %s54, 1
      %s56 = scalar_select %p53, %s54, %s55
      %p59 = pneg %p53
      %p60 = scmp.eq.s32.totalorder %s30, 1
      %p61 = por %p59, %p60
      %p62 = scmp.ne.s32.totalorder %s54, %s57
      %p63 = scmp.eq.s32.totalorder %s30, 0
      %p64 = por %p62, %p63
      %p65 = scmp.ne.s32.totalorder %s54, %s57
      %p66 = scmp.eq.s32.totalorder %s35, 1
      %p67 = por %p65, %p66
      %p68 = scmp.ne.s32.totalorder %s57, %s58
      %p69 = scmp.eq.s32.totalorder %s35, 0
      %p70 = por %p68, %p69
      %p71 = scmp.ne.s32.totalorder %s57, %s58
      %p72 = scmp.eq.s32.totalorder %s36, 1
      %p73 = por %p71, %p72
      %p75 = scmp.ne.s32.totalorder %s58, %s74
      %p76 = scmp.eq.s32.totalorder %s36, 0
      %p77 = por %p75, %p76
      %s78 = ssub.s32 %s37, %s49
      %p79 = scmp.eq.s32.totalorder %s78, 0
      %s81 = sadd.s32 %s80, 1
      %s82 = scalar_select %p79, %s80, %s81
      %p85 = pneg %p79
      %p86 = scmp.eq.s32.totalorder %s30, 1
      %p87 = por %p85, %p86
      %p88 = scmp.ne.s32.totalorder %s80, %s83
      %p89 = scmp.eq.s32.totalorder %s30, 0
      %p90 = por %p88, %p89
      %p91 = scmp.ne.s32.totalorder %s80, %s83
      %p92 = scmp.eq.s32.totalorder %s35, 1
      %p93 = por %p91, %p92
      %p94 = scmp.ne.s32.totalorder %s83, %s84
      %p95 = scmp.eq.s32.totalorder %s35, 0
      %p96 = por %p94, %p95
      %p97 = scmp.ne.s32.totalorder %s83, %s84
      %p98 = scmp.eq.s32.totalorder %s36, 1
      %p99 = por %p97, %p98
      %p101 = scmp.ne.s32.totalorder %s84, %s100
      %p102 = scmp.eq.s32.totalorder %s36, 0
      %p103 = por %p101, %p102
      %s105 = sadd.s32 %s104, 1
      %p108 = scmp.eq.s32.totalorder %s30, 1
      %p109 = scmp.ne.s32.totalorder %s104, %s106
      %p110 = scmp.eq.s32.totalorder %s30, 0
      %p111 = por %p109, %p110
      %p112 = scmp.ne.s32.totalorder %s104, %s106
      %p113 = scmp.eq.s32.totalorder %s35, 1
      %p114 = por %p112, %p113
      %p115 = scmp.ne.s32.totalorder %s106, %s107
      %p116 = scmp.eq.s32.totalorder %s35, 0
      %p117 = por %p115, %p116
      %p118 = scmp.ne.s32.totalorder %s106, %s107
      %p119 = scmp.eq.s32.totalorder %s36, 1
      %p120 = por %p118, %p119
      %p122 = scmp.ne.s32.totalorder %s107, %s121
      %p123 = scmp.eq.s32.totalorder %s36, 0
      %p124 = por %p122, %p123
      %s126 = sadd.s32 %s125, 1
      %p129 = scmp.eq.s32.totalorder %s30, 1
      %p130 = scmp.ne.s32.totalorder %s125, %s127
      %p131 = scmp.eq.s32.totalorder %s30, 0
      %p132 = por %p130, %p131
      %p133 = scmp.ne.s32.totalorder %s125, %s127
      %p134 = scmp.eq.s32.totalorder %s35, 1
      %p135 = por %p133, %p134
      %p136 = scmp.ne.s32.totalorder %s127, %s128
      %p137 = scmp.eq.s32.totalorder %s35, 0
      %p138 = por %p136, %p137
      %p139 = scmp.ne.s32.totalorder %s127, %s128
      %p140 = scmp.eq.s32.totalorder %s36, 1
      %p141 = por %p139, %p140
      %p143 = scmp.ne.s32.totalorder %s128, %s142
      %p144 = scmp.eq.s32.totalorder %s36, 0
      %p145 = por %p143, %p144
      %s147 = sadd.s32 %s146, 1
      %p150 = scmp.eq.s32.totalorder %s30, 1
      %p151 = scmp.ne.s32.totalorder %s146, %s148
      %p152 = scmp.eq.s32.totalorder %s30, 0
      %p153 = por %p151, %p152
      %p154 = scmp.ne.s32.totalorder %s146, %s148
      %p155 = scmp.eq.s32.totalorder %s35, 1
      %p156 = por %p154, %p155
      %p157 = scmp.ne.s32.totalorder %s148, %s149
      %p158 = scmp.eq.s32.totalorder %s35, 0
      %p159 = por %p157, %p158
      %p160 = scmp.ne.s32.totalorder %s148, %s149
      %p161 = scmp.eq.s32.totalorder %s36, 1
      %p162 = por %p160, %p161
      %p164 = scmp.ne.s32.totalorder %s149, %s163
      %p165 = scmp.eq.s32.totalorder %s36, 0
      %p166 = por %p164, %p165
      %s168 = sadd.s32 %s167, 1
      %p171 = scmp.eq.s32.totalorder %s30, 1
      %p172 = scmp.ne.s32.totalorder %s167, %s169
      %p173 = scmp.eq.s32.totalorder %s30, 0
      %p174 = por %p172, %p173
      %p175 = scmp.ne.s32.totalorder %s167, %s169
      %p176 = scmp.eq.s32.totalorder %s35, 1
      %p177 = por %p175, %p176
      %p178 = scmp.ne.s32.totalorder %s169, %s170
      %p179 = scmp.eq.s32.totalorder %s35, 0
      %p180 = por %p178, %p179
      %p181 = scmp.ne.s32.totalorder %s169, %s170
      %p182 = scmp.eq.s32.totalorder %s36, 1
      %p183 = por %p181, %p182
      %p185 = scmp.ne.s32.totalorder %s170, %s184
      %p186 = scmp.eq.s32.totalorder %s36, 0
      %p187 = por %p185, %p186
      %s189 = sadd.s32 %s188, 1
      %p192 = scmp.eq.s32.totalorder %s30, 1
      %p193 = scmp.ne.s32.totalorder %s188, %s190
      %p194 = scmp.eq.s32.totalorder %s30, 0
      %p195 = por %p193, %p194
      %p196 = scmp.ne.s32.totalorder %s188, %s190
      %p197 = scmp.eq.s32.totalorder %s35, 1
      %p198 = por %p196, %p197
      %p199 = scmp.ne.s32.totalorder %s190, %s191
      %p200 = scmp.eq.s32.totalorder %s35, 0
      %p201 = por %p199, %p200
      %p202 = scmp.ne.s32.totalorder %s190, %s191
      %p203 = scmp.eq.s32.totalorder %s36, 1
      %p204 = por %p202, %p203
      %p206 = scmp.ne.s32.totalorder %s191, %s205
      %p207 = scmp.eq.s32.totalorder %s36, 0
      %p208 = por %p206, %p207
      %s210 = sadd.s32 %s209, 1
      %p213 = scmp.eq.s32.totalorder %s30, 1
      %p214 = scmp.ne.s32.totalorder %s209, %s211
      %p215 = scmp.eq.s32.totalorder %s30, 0
      %p216 = por %p214, %p215
      %p217 = scmp.ne.s32.totalorder %s209, %s211
      %p218 = scmp.eq.s32.totalorder %s35, 1
      %p219 = por %p217, %p218
      %p220 = scmp.ne.s32.totalorder %s211, %s212
      %p221 = scmp.eq.s32.totalorder %s35, 0
      %p222 = por %p220, %p221
      %p223 = scmp.ne.s32.totalorder %s211, %s212
      %p224 = scmp.eq.s32.totalorder %s36, 1
      %p225 = por %p223, %p224
      %p227 = scmp.ne.s32.totalorder %s212, %s226
      %p228 = scmp.eq.s32.totalorder %s36, 0
      %p229 = por %p227, %p228
      %s231 = sadd.s32 %s230, 1
      %p234 = scmp.eq.s32.totalorder %s30, 1
      %p235 = scmp.ne.s32.totalorder %s230, %s232
      %p236 = scmp.eq.s32.totalorder %s30, 0
      %p237 = por %p235, %p236
      %p238 = scmp.ne.s32.totalorder %s230, %s232
      %p239 = scmp.eq.s32.totalorder %s35, 1
      %p240 = por %p238, %p239
      %p241 = scmp.ne.s32.totalorder %s232, %s233
      %p242 = scmp.eq.s32.totalorder %s35, 0
      %p243 = por %p241, %p242
      %p244 = scmp.ne.s32.totalorder %s232, %s233
      %p245 = scmp.eq.s32.totalorder %s36, 1
      %p246 = por %p244, %p245
      %p248 = scmp.ne.s32.totalorder %s233, %s247
      %p249 = scmp.eq.s32.totalorder %s36, 0
      %p250 = por %p248, %p249
      %s252 = sadd.s32 %s251, 1
      %p255 = scmp.eq.s32.totalorder %s30, 1
      %p256 = scmp.ne.s32.totalorder %s251, %s253
      %p257 = scmp.eq.s32.totalorder %s30, 0
      %p258 = por %p256, %p257
      %p259 = scmp.ne.s32.totalorder %s251, %s253
      %p260 = scmp.eq.s32.totalorder %s35, 1
      %p261 = por %p259, %p260
      %p262 = scmp.ne.s32.totalorder %s253, %s254
      %p263 = scmp.eq.s32.totalorder %s35, 0
      %p264 = por %p262, %p263
      %p265 = scmp.ne.s32.totalorder %s253, %s254
      %p266 = scmp.eq.s32.totalorder %s36, 1
      %p267 = por %p265, %p266
      %p269 = scmp.ne.s32.totalorder %s254, %s268
      %p270 = scmp.eq.s32.totalorder %s36, 0
      %p271 = por %p269, %p270
      %s273 = sadd.s32 %s272, 1
      %p276 = scmp.eq.s32.totalorder %s30, 1
      %p277 = scmp.ne.s32.totalorder %s272, %s274
      %p278 = scmp.eq.s32.totalorder %s30, 0
      %p279 = por %p277, %p278
      %p280 = scmp.ne.s32.totalorder %s272, %s274
      %p281 = scmp.eq.s32.totalorder %s35, 1
      %p282 = por %p280, %p281
      %p283 = scmp.ne.s32.totalorder %s274, %s275
      %p284 = scmp.eq.s32.totalorder %s35, 0
      %p285 = por %p283, %p284
      %p286 = scmp.ne.s32.totalorder %s274, %s275
      %p287 = scmp.eq.s32.totalorder %s36, 1
      %p288 = por %p286, %p287
      %p290 = scmp.ne.s32.totalorder %s275, %s289
      %p291 = scmp.eq.s32.totalorder %s36, 0
      %p292 = por %p290, %p291
      %s294 = sadd.s32 %s293, 1
      %p297 = scmp.eq.s32.totalorder %s30, 1
      %p298 = scmp.ne.s32.totalorder %s293, %s295
      %p299 = scmp.eq.s32.totalorder %s30, 0
      %p300 = por %p298, %p299
      %p301 = scmp.ne.s32.totalorder %s293, %s295
      %p302 = scmp.eq.s32.totalorder %s35, 1
      %p303 = por %p301, %p302
      %p304 = scmp.ne.s32.totalorder %s295, %s296
      %p305 = scmp.eq.s32.totalorder %s35, 0
      %p306 = por %p304, %p305
      %p307 = scmp.ne.s32.totalorder %s295, %s296
      %p308 = scmp.eq.s32.totalorder %s36, 1
      %p309 = por %p307, %p308
      %p311 = scmp.ne.s32.totalorder %s296, %s310
      %p312 = scmp.eq.s32.totalorder %s36, 0
      %p313 = por %p311, %p312
      %s315 = sadd.s32 %s314, 1
      %p318 = scmp.eq.s32.totalorder %s30, 1
      %p319 = scmp.ne.s32.totalorder %s314, %s316
      %p320 = scmp.eq.s32.totalorder %s30, 0
      %p321 = por %p319, %p320
      %p322 = scmp.ne.s32.totalorder %s314, %s316
      %p323 = scmp.eq.s32.totalorder %s35, 1
      %p324 = por %p322, %p323
      %p325 = scmp.ne.s32.totalorder %s316, %s317
      %p326 = scmp.eq.s32.totalorder %s35, 0
      %p327 = por %p325, %p326
      %p328 = scmp.ne.s32.totalorder %s316, %s317
      %p329 = scmp.eq.s32.totalorder %s36, 1
      %p330 = por %p328, %p329
      %p332 = scmp.ne.s32.totalorder %s317, %s331
      %p333 = scmp.eq.s32.totalorder %s36, 0
      %p334 = por %p332, %p333
      %s336 = sadd.s32 %s335, 1
      %p339 = scmp.eq.s32.totalorder %s30, 1
      %p340 = scmp.ne.s32.totalorder %s335, %s337
      %p341 = scmp.eq.s32.totalorder %s30, 0
      %p342 = por %p340, %p341
      %p343 = scmp.ne.s32.totalorder %s335, %s337
      %p344 = scmp.eq.s32.totalorder %s35, 1
      %p345 = por %p343, %p344
      %p346 = scmp.ne.s32.totalorder %s337, %s338
      %p347 = scmp.eq.s32.totalorder %s35, 0
      %p348 = por %p346, %p347
      %p349 = scmp.ne.s32.totalorder %s337, %s338
      %p350 = scmp.eq.s32.totalorder %s36, 1
      %p351 = por %p349, %p350
      %p353 = scmp.ne.s32.totalorder %s338, %s352
      %p354 = scmp.eq.s32.totalorder %s36, 0
      %p355 = por %p353, %p354
      %s357 = sadd.s32 %s356, 1
      %p360 = scmp.eq.s32.totalorder %s30, 1
      %p361 = scmp.ne.s32.totalorder %s356, %s358
      %p362 = scmp.eq.s32.totalorder %s30, 0
      %p363 = por %p361, %p362
      %p364 = scmp.ne.s32.totalorder %s356, %s358
      %p365 = scmp.eq.s32.totalorder %s35, 1
      %p366 = por %p364, %p365
      %p367 = scmp.ne.s32.totalorder %s358, %s359
      %p368 = scmp.eq.s32.totalorder %s35, 0
      %p369 = por %p367, %p368
      %p370 = scmp.ne.s32.totalorder %s358, %s359
      %p371 = scmp.eq.s32.totalorder %s36, 1
      %p372 = por %p370, %p371
      %p374 = scmp.ne.s32.totalorder %s359, %s373
      %p375 = scmp.eq.s32.totalorder %s36, 0
      %p376 = por %p374, %p375
      %s378 = sadd.s32 %s377, 1
      %p381 = scmp.eq.s32.totalorder %s30, 1
      %p382 = scmp.ne.s32.totalorder %s377, %s379
      %p383 = scmp.eq.s32.totalorder %s30, 0
      %p384 = por %p382, %p383
      %p385 = scmp.ne.s32.totalorder %s377, %s379
      %p386 = scmp.eq.s32.totalorder %s35, 1
      %p387 = por %p385, %p386
      %p388 = scmp.ne.s32.totalorder %s379, %s380
      %p389 = scmp.eq.s32.totalorder %s35, 0
      %p390 = por %p388, %p389
      %p391 = scmp.ne.s32.totalorder %s379, %s380
      %p392 = scmp.eq.s32.totalorder %s36, 1
      %p393 = por %p391, %p392
      %p395 = scmp.ne.s32.totalorder %s380, %s394
      %p396 = scmp.eq.s32.totalorder %s36, 0
      %p397 = por %p395, %p396
      %s398 = ssub.s32 %s37, %s49
      %s399 = ssub.s32 %s38, %s45
      %s400 = sor.u32 %s398, %s399
      %p401 = scmp.eq.s32.totalorder %s400, 0
      %s403 = sadd.s32 %s402, 1
      %s404 = scalar_select %p401, %s402, %s403
      %p407 = pneg %p401
      %p408 = scmp.eq.s32.totalorder %s30, 1
      %p409 = por %p407, %p408
      %p410 = scmp.ne.s32.totalorder %s402, %s405
      %p411 = scmp.eq.s32.totalorder %s30, 0
      %p412 = por %p410, %p411
      %p413 = scmp.ne.s32.totalorder %s402, %s405
      %p414 = scmp.eq.s32.totalorder %s35, 1
      %p415 = por %p413, %p414
      %p416 = scmp.ne.s32.totalorder %s405, %s406
      %p417 = scmp.eq.s32.totalorder %s35, 0
      %p418 = por %p416, %p417
      %p419 = scmp.ne.s32.totalorder %s405, %s406
      %p420 = scmp.eq.s32.totalorder %s36, 1
      %p421 = por %p419, %p420
      %p423 = scmp.ne.s32.totalorder %s406, %s422
      %p424 = scmp.eq.s32.totalorder %s36, 0
      %p425 = por %p423, %p424
      %s426 = ssub.s32 %s37, %s49
      %s427 = ssub.s32 %s38, %s45
      %s428 = sor.u32 %s426, %s427
      %p429 = scmp.eq.s32.totalorder %s428, 0
      %s431 = sadd.s32 %s430, 1
      %s432 = scalar_select %p429, %s430, %s431
      %p435 = pneg %p429
      %p436 = scmp.eq.s32.totalorder %s30, 1
      %p437 = por %p435, %p436
      %p438 = scmp.ne.s32.totalorder %s430, %s433
      %p439 = scmp.eq.s32.totalorder %s30, 0
      %p440 = por %p438, %p439
      %p441 = scmp.ne.s32.totalorder %s430, %s433
      %p442 = scmp.eq.s32.totalorder %s35, 1
      %p443 = por %p441, %p442
      %p444 = scmp.ne.s32.totalorder %s433, %s434
      %p445 = scmp.eq.s32.totalorder %s35, 0
      %p446 = por %p444, %p445
      %p447 = scmp.ne.s32.totalorder %s433, %s434
      %p448 = scmp.eq.s32.totalorder %s36, 1
      %p449 = por %p447, %p448
      %p451 = scmp.ne.s32.totalorder %s434, %s450
      %p452 = scmp.eq.s32.totalorder %s36, 0
      %p453 = por %p451, %p452
      %p454 = scmp.le.s32.totalorder 1, %s30
      %p455 = scmp.lt.s32.totalorder %s30, 3
      %p456 = pnand %p454, %p455
      %p457 = pneg %p456
      // Predicated region
      $region9: #{tpu_custom_call.1} parent=5 // pred_check
        _
      $region10: #{tpu_custom_call.1} parent=5 // pred_check_branch
        %459 = sbr.rel (%p456) target = $region12
      $region11: #{tpu_custom_call.1} parent=5 // pred_region
        %s460 = ssub.s32 %s30, 1
        // Predicated region
        $region13: #{tpu_custom_call.1} parent=11 // pred_check
          %p461 = pneg %p117
        $region14: #{tpu_custom_call.1} parent=11 // pred_check_branch
          %463 = sbr.rel (%p461) target = $region16
        $region15: #{tpu_custom_call.1} parent=11 // pred_region
          _
        $region16: #{tpu_custom_call.1} parent=11 // pred_fallthru
          _
        // Predicated region
        $region17: #{tpu_custom_call.1} parent=11 // pred_check
          %p464 = pneg %p138
        $region18: #{tpu_custom_call.1} parent=11 // pred_check_branch
          %466 = sbr.rel (%p464) target = $region20
        $region19: #{tpu_custom_call.1} parent=11 // pred_region
          _
        $region20: #{tpu_custom_call.1} parent=11 // pred_fallthru
          _
        // Predicated region
        $region21: #{tpu_custom_call.1} parent=11 // pred_check
          %p467 = pneg %p159
        $region22: #{tpu_custom_call.1} parent=11 // pred_check_branch
          %469 = sbr.rel (%p467) target = $region24
        $region23: #{tpu_custom_call.1} parent=11 // pred_region
          _
        $region24: #{tpu_custom_call.1} parent=11 // pred_fallthru
          _
        // Predicated region
        $region25: #{tpu_custom_call.1} parent=11 // pred_check
          %p470 = pneg %p180
        $region26: #{tpu_custom_call.1} parent=11 // pred_check_branch
          %472 = sbr.rel (%p470) target = $region28
        $region27: #{tpu_custom_call.1} parent=11 // pred_region
          _
        $region28: #{tpu_custom_call.1} parent=11 // pred_fallthru
          _
        // Predicated region
        $region29: #{tpu_custom_call.1} parent=11 // pred_check
          %p473 = pneg %p201
        $region30: #{tpu_custom_call.1} parent=11 // pred_check_branch
          %475 = sbr.rel (%p473) target = $region32
        $region31: #{tpu_custom_call.1} parent=11 // pred_region
          _
        $region32: #{tpu_custom_call.1} parent=11 // pred_fallthru
          _
        // Predicated region
        $region33: #{tpu_custom_call.1} parent=11 // pred_check
          %p476 = pneg %p222
        $region34: #{tpu_custom_call.1} parent=11 // pred_check_branch
          %478 = sbr.rel (%p476) target = $region36
        $region35: #{tpu_custom_call.1} parent=11 // pred_region
          _
        $region36: #{tpu_custom_call.1} parent=11 // pred_fallthru
          _
        // Predicated region
        $region37: #{tpu_custom_call.1} parent=11 // pred_check
          %p479 = pneg %p243
        $region38: #{tpu_custom_call.1} parent=11 // pred_check_branch
          %481 = sbr.rel (%p479) target = $region40
        $region39: #{tpu_custom_call.1} parent=11 // pred_region
          _
        $region40: #{tpu_custom_call.1} parent=11 // pred_fallthru
          _
        // Predicated region
        $region41: #{tpu_custom_call.1} parent=11 // pred_check
          %p482 = pneg %p264
        $region42: #{tpu_custom_call.1} parent=11 // pred_check_branch
          %484 = sbr.rel (%p482) target = $region44
        $region43: #{tpu_custom_call.1} parent=11 // pred_region
          _
        $region44: #{tpu_custom_call.1} parent=11 // pred_fallthru
          _
        // Predicated region
        $region45: #{tpu_custom_call.1} parent=11 // pred_check
          %p485 = pneg %p285
        $region46: #{tpu_custom_call.1} parent=11 // pred_check_branch
          %487 = sbr.rel (%p485) target = $region48
        $region47: #{tpu_custom_call.1} parent=11 // pred_region
          _
        $region48: #{tpu_custom_call.1} parent=11 // pred_fallthru
          _
        // Predicated region
        $region49: #{tpu_custom_call.1} parent=11 // pred_check
          %p488 = pneg %p306
        $region50: #{tpu_custom_call.1} parent=11 // pred_check_branch
          %490 = sbr.rel (%p488) target = $region52
        $region51: #{tpu_custom_call.1} parent=11 // pred_region
          _
        $region52: #{tpu_custom_call.1} parent=11 // pred_fallthru
          _
        // Predicated region
        $region53: #{tpu_custom_call.1} parent=11 // pred_check
          %p491 = pneg %p327
        $region54: #{tpu_custom_call.1} parent=11 // pred_check_branch
          %493 = sbr.rel (%p491) target = $region56
        $region55: #{tpu_custom_call.1} parent=11 // pred_region
          _
        $region56: #{tpu_custom_call.1} parent=11 // pred_fallthru
          _
        // Predicated region
        $region57: #{tpu_custom_call.1} parent=11 // pred_check
          %p494 = pneg %p348
        $region58: #{tpu_custom_call.1} parent=11 // pred_check_branch
          %496 = sbr.rel (%p494) target = $region60
        $region59: #{tpu_custom_call.1} parent=11 // pred_region
          _
        $region60: #{tpu_custom_call.1} parent=11 // pred_fallthru
          _
        // Predicated region
        $region61: #{tpu_custom_call.1} parent=11 // pred_check
          %p497 = pneg %p369
        $region62: #{tpu_custom_call.1} parent=11 // pred_check_branch
          %499 = sbr.rel (%p497) target = $region64
        $region63: #{tpu_custom_call.1} parent=11 // pred_region
          _
        $region64: #{tpu_custom_call.1} parent=11 // pred_fallthru
          _
        // Predicated region
        $region65: #{tpu_custom_call.1} parent=11 // pred_check
          %p500 = pneg %p390
        $region66: #{tpu_custom_call.1} parent=11 // pred_check_branch
          %502 = sbr.rel (%p500) target = $region68
        $region67: #{tpu_custom_call.1} parent=11 // pred_region
          _
        $region68: #{tpu_custom_call.1} parent=11 // pred_fallthru
          _
      $region12: #{tpu_custom_call.1} parent=5 // pred_fallthru
        _
      %p503 = scmp.lt.s32.totalorder %s30, 2
      // Predicated region
      $region69: #{tpu_custom_call.1} parent=5 // pred_check
        %p504 = pneg %p503
      $region70: #{tpu_custom_call.1} parent=5 // pred_check_branch
        %506 = sbr.rel (%p504) target = $region72
      $region71: #{tpu_custom_call.1} parent=5 // pred_region
        // Predicated region
        $region73: #{tpu_custom_call.1} parent=71 // pred_check
          %p507 = pneg %p64
        $region74: #{tpu_custom_call.1} parent=71 // pred_check_branch
          %509 = sbr.rel (%p507) target = $region76
        $region75: #{tpu_custom_call.1} parent=71 // pred_region
          %p510 = scmp.lt.s32.totalorder %s37, 1
          %s511 = scalar_select %p510, %s37, 1
          %p512 = scmp.lt.s32.totalorder %s38, 0
          %s513 = scalar_select %p512, %s38, 0
          %s514 = sadd.s32 %s513, %s511
          %s515 = smul.addr %s514, 8
          %s516 = scalar_lea.vmem %s0, %s515
        $region76: #{tpu_custom_call.1} parent=71 // pred_fallthru
          _
        // Predicated region
        $region77: #{tpu_custom_call.1} parent=71 // pred_check
          %p517 = pneg %p90
        $region78: #{tpu_custom_call.1} parent=71 // pred_check_branch
          %519 = sbr.rel (%p517) target = $region80
        $region79: #{tpu_custom_call.1} parent=71 // pred_region
          %p520 = scmp.lt.s32.totalorder %s37, 1
          %s521 = scalar_select %p520, %s37, 1
          %s522 = smul.addr %s521, 8
          %s523 = scalar_lea.vmem %s1, %s522
        $region80: #{tpu_custom_call.1} parent=71 // pred_fallthru
          _
      $region72: #{tpu_custom_call.1} parent=5 // pred_fallthru
        _
      %p524 = scmp.le.s32.totalorder 1, %s30
      %p525 = scmp.lt.s32.totalorder %s30, 3
      %p526 = pnand %p524, %p525
      %p527 = pneg %p526
      // Predicated region
      $region81: #{tpu_custom_call.1} parent=5 // pred_check
        _
      $region82: #{tpu_custom_call.1} parent=5 // pred_check_branch
        %529 = sbr.rel (%p526) target = $region84
      $region83: #{tpu_custom_call.1} parent=5 // pred_region
        %s530 = ssub.s32 %s30, 1
        %p531 = scmp.lt.s32.totalorder %s39, 1
        %s532 = scalar_select %p531, %s39, 1
        %p533 = scmp.lt.s32.totalorder %s40, 0
        %s534 = scalar_select %p533, %s40, 0
        %s535 = sadd.s32 %s534, %s532
        %s536 = smul.addr %s535, 8
        %s537 = scalar_lea.vmem %s0, %s536
        %p538 = pneg %p70
        %p539 = pneg %p67
        %p540 = scmp.lt.s32.totalorder %s39, 1
        %s541 = scalar_select %p540, %s39, 1
        %s542 = smul.addr %s541, 8
        %s543 = scalar_lea.vmem %s1, %s542
        %p544 = pneg %p96
        %p545 = pneg %p93
        %p546 = pneg %p117
        %p547 = pneg %p114
        %p548 = pneg %p138
        %p549 = pneg %p135
        %p550 = pneg %p159
        %p551 = pneg %p156
        %p552 = pneg %p180
        %p553 = pneg %p177
        %p554 = pneg %p201
        %p555 = pneg %p198
        %p556 = pneg %p222
        %p557 = pneg %p219
        %p558 = pneg %p243
        %p559 = pneg %p240
        %p560 = pneg %p264
        %p561 = pneg %p261
        %p562 = pneg %p285
        %p563 = pneg %p282
        %p564 = pneg %p306
        %p565 = pneg %p303
        %p566 = pneg %p327
        %p567 = pneg %p324
        %p568 = pneg %p348
        %p569 = pneg %p345
        %p570 = pneg %p369
        %p571 = pneg %p366
        %p572 = pneg %p390
        %p573 = pneg %p387
        %p574 = pneg %p418
        %p575 = pneg %p415
        %s576 = sand.u32 %s405, 1
        %s577 = scalar_lea.sflag [#allocation3], %s576
        %s578 = sand.u32 %s405, 1
        %s579 = smul.addr %s578, 8
        %s580 = scalar_lea.vmem [#allocation2], %s579
        %p581 = pneg %p446
        %p582 = pneg %p443
        %s583 = sand.u32 %s433, 1
        %s584 = scalar_lea.sflag [#allocation5], %s583
        %s585 = sand.u32 %s433, 1
        %s586 = smul.addr %s585, 32
        %s587 = scalar_lea.vmem [#allocation4], %s586
        %p588 = scmp.lt.s32.totalorder %s39, 1
        %s589 = scalar_select %p588, %s39, 1
        %p590 = scmp.lt.s32.totalorder %s40, 0
        %s591 = scalar_select %p590, %s40, 0
        %s592 = sadd.s32 %s591, %s589
        %s593 = smul.addr %s592, 8
        %s594 = scalar_lea.vmem %s0, %s593
        %p595 = scmp.lt.s32.totalorder %s39, 1
        %s596 = scalar_select %p595, %s39, 1
        %s597 = smul.addr %s596, 8
        %s598 = scalar_lea.vmem %s1, %s597
        %v600 = vld [vmem:[%s594] sm:$0xff]
        %v601 = vld [vmem:[%s598] sm:$0xff]
        %v602 = vpack.c.bf16 %v600, %v600
        %v603 = vpack.c.bf16 %v601, %v601
        %v604 = vld [vmem:[%s2] sm:$0xf]
        %v605 = vld [vmem:[%s2 + $0x4] sm:$0xf]
        %v606 = vld [vmem:[%s2 + $0x8] sm:$0xf]
        %v607 = vld [vmem:[%s2 + $0xc] sm:$0xf]
        %v608 = vld [vmem:[%s2 + $0x10] sm:$0xf]
        %v609 = vld [vmem:[%s2 + $0x14] sm:$0xf]
        %v610 = vld [vmem:[%s2 + $0x18] sm:$0xf]
        %v611 = vld [vmem:[%s2 + $0x1c] sm:$0xf]
        %v612 = vld [vmem:[%s2 + $0x20] sm:$0xf]
        %v613 = vld [vmem:[%s2 + $0x24] sm:$0xf]
        %v614 = vld [vmem:[%s2 + $0x28] sm:$0xf]
        %v615 = vld [vmem:[%s2 + $0x2c] sm:$0xf]
        %v616 = vld [vmem:[%s2 + $0x30] sm:$0xf]
        %v617 = vld [vmem:[%s2 + $0x34] sm:$0xf]
        %v618 = vld [vmem:[%s2 + $0x38] sm:$0xf]
        %v619 = vld [vmem:[%s2 + $0x3c] sm:$0xf]
        %v620 = vld [vmem:[%s3] sm:$0x1]
        %v621 = vld [vmem:[%s3 + $0x1] sm:$0x1]
        %v622 = vld [vmem:[%s3 + $0x2] sm:$0x1]
        %v623 = vld [vmem:[%s3 + $0x3] sm:$0x1]
        %v628 = vlaneseq
        %v629 = vshrl.u32 %v628, 7
        %v630 = vsub.s32 0, %v629
        %v631 = vrot.slane %v620, %v630
        %v632 = vlaneseq
        %v633 = vshrl.u32 %v632, 7
        %v634 = vsub.s32 0, %v633
        %v635 = vrot.slane %v621, %v634
        %v636 = vlaneseq
        %v637 = vshrl.u32 %v636, 7
        %v638 = vsub.s32 0, %v637
        %v639 = vrot.slane %v622, %v638
        %v640 = vlaneseq
        %v641 = vshrl.u32 %v640, 7
        %v642 = vsub.s32 0, %v641
        %v643 = vrot.slane %v623, %v642
        %v652 = vunpack.c.l.b16 %v604
        %v653 = vunpack.c.l.b16 %v605
        %v654 = vunpack.c.l.b16 %v606
        %v655 = vunpack.c.l.b16 %v607
        %v656 = vpack.c.b16 %v653, %v652
        %v657 = vpack.c.b16 %v655, %v654
        %vm660 = vcmask 261120
        %v662 = vsel %vm660, %v602, 0
        %664 = vmatprep.subr.bf16.mxu0 0
        %665 = vmatpush1.bf16.msra.mxu0 0
        %666 = vmatprep.subr.bf16.mxu0 0
        %667 = vmatpush1.bf16.msra.mxu0 0
        %668 = vmatprep.subr.bf16.mxu0 0
        %669 = vmatpush1.bf16.msra.mxu0 0
        %670 = vmatprep.subr.bf16.mxu0 0
        %671 = vmatpush1.bf16.msra.mxu0 0
        %672 = vmatprep.subr.bf16.mxu0 0
        %673 = vmatpush1.bf16.msra.mxu0 0
        %674 = vmatprep.subr.bf16.mxu0 0
        %675 = vmatpush1.bf16.msra.mxu0 0
        %676 = vmatprep.subr.bf16.mxu0 0
        %677 = vmatpush1.bf16.msra.mxu0 %v657
        %678 = vmatprep.subr.bf16.mxu0 0
        %679 = vmatpush1.bf16.msra.mxu0 %v656
        %680 = vmatprep.subr.bf16.mxu0 0
        %681 = vmatpush2.bf16.msra.mxu0 0
        %682 = vmatprep.subr.bf16.mxu0 0
        %683 = vmatpush2.bf16.msra.mxu0 0
        %684 = vmatprep.subr.bf16.mxu0 0
        %685 = vmatpush2.bf16.msra.mxu0 0
        %686 = vmatprep.subr.bf16.mxu0 0
        %687 = vmatpush2.bf16.msra.mxu0 0
        %688 = vmatprep.subr.bf16.mxu0 0
        %689 = vmatpush2.bf16.msra.mxu0 0
        %690 = vmatprep.subr.bf16.mxu0 0
        %691 = vmatpush2.bf16.msra.mxu0 0
        %692 = vmatprep.subr.bf16.mxu0 0
        %693 = vmatpush2.bf16.msra.mxu0 0
        %694 = vmatprep.subr.bf16.mxu0 0
        %695 = vmatpush2.bf16.msra.mxu0 0
        %696 = vmatprep.mubr.bf16.mxu0 0
        %697 = vmatmul.mubr.bf16.gmra.mxu0 %v662
        %v698 = vpop.f32.mrf.mxu0
        %v699 = vadd.f32 %v631, %v698
        %v700 = vpop.f32.mrf.mxu0
        %v701 = vpop.f32.mrf.mxu0
        %v702 = vpop.f32.mrf.mxu0
        %703 = vdwg.mxu0
        %v708 = vunpack.c.l.b16 %v608
        %v709 = vunpack.c.l.b16 %v609
        %v710 = vunpack.c.l.b16 %v610
        %v711 = vunpack.c.l.b16 %v611
        %v712 = vpack.c.b16 %v709, %v708
        %v713 = vpack.c.b16 %v711, %v710
        %716 = vmatprep.subr.bf16.mxu0 0
        %717 = vmatpush1.bf16.msra.mxu0 0
        %718 = vmatprep.subr.bf16.mxu0 0
        %719 = vmatpush1.bf16.msra.mxu0 0
        %720 = vmatprep.subr.bf16.mxu0 0
        %721 = vmatpush1.bf16.msra.mxu0 0
        %722 = vmatprep.subr.bf16.mxu0 0
        %723 = vmatpush1.bf16.msra.mxu0 0
        %724 = vmatprep.subr.bf16.mxu0 0
        %725 = vmatpush1.bf16.msra.mxu0 0
        %726 = vmatprep.subr.bf16.mxu0 0
        %727 = vmatpush1.bf16.msra.mxu0 0
        %728 = vmatprep.subr.bf16.mxu0 0
        %729 = vmatpush1.bf16.msra.mxu0 %v713
        %730 = vmatprep.subr.bf16.mxu0 0
        %731 = vmatpush1.bf16.msra.mxu0 %v712
        %732 = vmatprep.subr.bf16.mxu0 0
        %733 = vmatpush2.bf16.msra.mxu0 0
        %734 = vmatprep.subr.bf16.mxu0 0
        %735 = vmatpush2.bf16.msra.mxu0 0
        %736 = vmatprep.subr.bf16.mxu0 0
        %737 = vmatpush2.bf16.msra.mxu0 0
        %738 = vmatprep.subr.bf16.mxu0 0
        %739 = vmatpush2.bf16.msra.mxu0 0
        %740 = vmatprep.subr.bf16.mxu0 0
        %741 = vmatpush2.bf16.msra.mxu0 0
        %742 = vmatprep.subr.bf16.mxu0 0
        %743 = vmatpush2.bf16.msra.mxu0 0
        %744 = vmatprep.subr.bf16.mxu0 0
        %745 = vmatpush2.bf16.msra.mxu0 0
        %746 = vmatprep.subr.bf16.mxu0 0
        %747 = vmatpush2.bf16.msra.mxu0 0
        %748 = vmatprep.mubr.bf16.mxu0 0
        %749 = vmatmul.mubr.bf16.gmra.mxu0 %v662
        %v750 = vpop.f32.mrf.mxu0
        %v751 = vadd.f32 %v635, %v750
        %v752 = vpop.f32.mrf.mxu0
        %v753 = vpop.f32.mrf.mxu0
        %v754 = vpop.f32.mrf.mxu0
        %755 = vdwg.mxu0
        %v760 = vunpack.c.l.b16 %v612
        %v761 = vunpack.c.l.b16 %v613
        %v762 = vunpack.c.l.b16 %v614
        %v763 = vunpack.c.l.b16 %v615
        %v764 = vpack.c.b16 %v761, %v760
        %v765 = vpack.c.b16 %v763, %v762
        %768 = vmatprep.subr.bf16.mxu0 0
        %769 = vmatpush1.bf16.msra.mxu0 0
        %770 = vmatprep.subr.bf16.mxu0 0
        %771 = vmatpush1.bf16.msra.mxu0 0
        %772 = vmatprep.subr.bf16.mxu0 0
        %773 = vmatpush1.bf16.msra.mxu0 0
        %774 = vmatprep.subr.bf16.mxu0 0
        %775 = vmatpush1.bf16.msra.mxu0 0
        %776 = vmatprep.subr.bf16.mxu0 0
        %777 = vmatpush1.bf16.msra.mxu0 0
        %778 = vmatprep.subr.bf16.mxu0 0
        %779 = vmatpush1.bf16.msra.mxu0 0
        %780 = vmatprep.subr.bf16.mxu0 0
        %781 = vmatpush1.bf16.msra.mxu0 %v765
        %782 = vmatprep.subr.bf16.mxu0 0
        %783 = vmatpush1.bf16.msra.mxu0 %v764
        %784 = vmatprep.subr.bf16.mxu0 0
        %785 = vmatpush2.bf16.msra.mxu0 0
        %786 = vmatprep.subr.bf16.mxu0 0
        %787 = vmatpush2.bf16.msra.mxu0 0
        %788 = vmatprep.subr.bf16.mxu0 0
        %789 = vmatpush2.bf16.msra.mxu0 0
        %790 = vmatprep.subr.bf16.mxu0 0
        %791 = vmatpush2.bf16.msra.mxu0 0
        %792 = vmatprep.subr.bf16.mxu0 0
        %793 = vmatpush2.bf16.msra.mxu0 0
        %794 = vmatprep.subr.bf16.mxu0 0
        %795 = vmatpush2.bf16.msra.mxu0 0
        %796 = vmatprep.subr.bf16.mxu0 0
        %797 = vmatpush2.bf16.msra.mxu0 0
        %798 = vmatprep.subr.bf16.mxu0 0
        %799 = vmatpush2.bf16.msra.mxu0 0
        %800 = vmatprep.mubr.bf16.mxu0 0
        %801 = vmatmul.mubr.bf16.gmra.mxu0 %v662
        %v802 = vpop.f32.mrf.mxu0
        %v803 = vadd.f32 %v639, %v802
        %v804 = vpop.f32.mrf.mxu0
        %v805 = vpop.f32.mrf.mxu0
        %v806 = vpop.f32.mrf.mxu0
        %807 = vdwg.mxu0
        %v812 = vunpack.c.l.b16 %v616
        %v813 = vunpack.c.l.b16 %v617
        %v814 = vunpack.c.l.b16 %v618
        %v815 = vunpack.c.l.b16 %v619
        %v816 = vpack.c.b16 %v813, %v812
        %v817 = vpack.c.b16 %v815, %v814
        %820 = vmatprep.subr.bf16.mxu0 0
        %821 = vmatpush1.bf16.msra.mxu0 0
        %822 = vmatprep.subr.bf16.mxu0 0
        %823 = vmatpush1.bf16.msra.mxu0 0
        %824 = vmatprep.subr.bf16.mxu0 0
        %825 = vmatpush1.bf16.msra.mxu0 0
        %826 = vmatprep.subr.bf16.mxu0 0
        %827 = vmatpush1.bf16.msra.mxu0 0
        %828 = vmatprep.subr.bf16.mxu0 0
        %829 = vmatpush1.bf16.msra.mxu0 0
        %830 = vmatprep.subr.bf16.mxu0 0
        %831 = vmatpush1.bf16.msra.mxu0 0
        %832 = vmatprep.subr.bf16.mxu0 0
        %833 = vmatpush1.bf16.msra.mxu0 %v817
        %834 = vmatprep.subr.bf16.mxu0 0
        %835 = vmatpush1.bf16.msra.mxu0 %v816
        %836 = vmatprep.subr.bf16.mxu0 0
        %837 = vmatpush2.bf16.msra.mxu0 0
        %838 = vmatprep.subr.bf16.mxu0 0
        %839 = vmatpush2.bf16.msra.mxu0 0
        %840 = vmatprep.subr.bf16.mxu0 0
        %841 = vmatpush2.bf16.msra.mxu0 0
        %842 = vmatprep.subr.bf16.mxu0 0
        %843 = vmatpush2.bf16.msra.mxu0 0
        %844 = vmatprep.subr.bf16.mxu0 0
        %845 = vmatpush2.bf16.msra.mxu0 0
        %846 = vmatprep.subr.bf16.mxu0 0
        %847 = vmatpush2.bf16.msra.mxu0 0
        %848 = vmatprep.subr.bf16.mxu0 0
        %849 = vmatpush2.bf16.msra.mxu0 0
        %850 = vmatprep.subr.bf16.mxu0 0
        %851 = vmatpush2.bf16.msra.mxu0 0
        %852 = vmatprep.mubr.bf16.mxu0 0
        %853 = vmatmul.mubr.bf16.gmra.mxu0 %v662
        %v854 = vpop.f32.mrf.mxu0
        %v855 = vadd.f32 %v643, %v854
        %v856 = vpop.f32.mrf.mxu0
        %v857 = vpop.f32.mrf.mxu0
        %v858 = vpop.f32.mrf.mxu0
        %859 = vdwg.mxu0
        %v860 = vmul.f32 %v699, 0.35355338
        %v861 = vmul.f32 %v751, 0.35355338
        %v862 = vmul.f32 %v803, 0.35355338
        %v863 = vmul.f32 %v855, 0.35355338
        %v864 = vld [vmem:[%s4] sm:$0xf]
        %v865 = vld [vmem:[%s4 + $0x4] sm:$0xf]
        %v866 = vld [vmem:[%s4 + $0x8] sm:$0xf]
        %v867 = vld [vmem:[%s4 + $0xc] sm:$0xf]
        %v868 = vld [vmem:[%s4 + $0x10] sm:$0xf]
        %v869 = vld [vmem:[%s4 + $0x14] sm:$0xf]
        %v870 = vld [vmem:[%s4 + $0x18] sm:$0xf]
        %v871 = vld [vmem:[%s4 + $0x1c] sm:$0xf]
        %v872 = vld [vmem:[%s4 + $0x20] sm:$0xf]
        %v873 = vld [vmem:[%s4 + $0x24] sm:$0xf]
        %v874 = vld [vmem:[%s4 + $0x28] sm:$0xf]
        %v875 = vld [vmem:[%s4 + $0x2c] sm:$0xf]
        %v876 = vld [vmem:[%s4 + $0x30] sm:$0xf]
        %v877 = vld [vmem:[%s4 + $0x34] sm:$0xf]
        %v878 = vld [vmem:[%s4 + $0x38] sm:$0xf]
        %v879 = vld [vmem:[%s4 + $0x3c] sm:$0xf]
        %v880 = vld [vmem:[%s5] sm:$0x1]
        %v881 = vld [vmem:[%s5 + $0x1] sm:$0x1]
        %v882 = vld [vmem:[%s5 + $0x2] sm:$0x1]
        %v883 = vld [vmem:[%s5 + $0x3] sm:$0x1]
        %v888 = vlaneseq
        %v889 = vshrl.u32 %v888, 7
        %v890 = vsub.s32 0, %v889
        %v891 = vrot.slane %v880, %v890
        %v892 = vlaneseq
        %v893 = vshrl.u32 %v892, 7
        %v894 = vsub.s32 0, %v893
        %v895 = vrot.slane %v881, %v894
        %v896 = vlaneseq
        %v897 = vshrl.u32 %v896, 7
        %v898 = vsub.s32 0, %v897
        %v899 = vrot.slane %v882, %v898
        %v900 = vlaneseq
        %v901 = vshrl.u32 %v900, 7
        %v902 = vsub.s32 0, %v901
        %v903 = vrot.slane %v883, %v902
        %v912 = vunpack.c.l.b16 %v864
        %v913 = vunpack.c.l.b16 %v865
        %v914 = vunpack.c.l.b16 %v866
        %v915 = vunpack.c.l.b16 %v867
        %v916 = vpack.c.b16 %v913, %v912
        %v917 = vpack.c.b16 %v915, %v914
        %v921 = vsel %vm660, %v603, 0
        %923 = vmatprep.subr.bf16.mxu0 0
        %924 = vmatpush1.bf16.msra.mxu0 0
        %925 = vmatprep.subr.bf16.mxu0 0
        %926 = vmatpush1.bf16.msra.mxu0 0
        %927 = vmatprep.subr.bf16.mxu0 0
        %928 = vmatpush1.bf16.msra.mxu0 0
        %929 = vmatprep.subr.bf16.mxu0 0
        %930 = vmatpush1.bf16.msra.mxu0 0
        %931 = vmatprep.subr.bf16.mxu0 0
        %932 = vmatpush1.bf16.msra.mxu0 0
        %933 = vmatprep.subr.bf16.mxu0 0
        %934 = vmatpush1.bf16.msra.mxu0 0
        %935 = vmatprep.subr.bf16.mxu0 0
        %936 = vmatpush1.bf16.msra.mxu0 %v917
        %937 = vmatprep.subr.bf16.mxu0 0
        %938 = vmatpush1.bf16.msra.mxu0 %v916
        %939 = vmatprep.subr.bf16.mxu0 0
        %940 = vmatpush2.bf16.msra.mxu0 0
        %941 = vmatprep.subr.bf16.mxu0 0
        %942 = vmatpush2.bf16.msra.mxu0 0
        %943 = vmatprep.subr.bf16.mxu0 0
        %944 = vmatpush2.bf16.msra.mxu0 0
        %945 = vmatprep.subr.bf16.mxu0 0
        %946 = vmatpush2.bf16.msra.mxu0 0
        %947 = vmatprep.subr.bf16.mxu0 0
        %948 = vmatpush2.bf16.msra.mxu0 0
        %949 = vmatprep.subr.bf16.mxu0 0
        %950 = vmatpush2.bf16.msra.mxu0 0
        %951 = vmatprep.subr.bf16.mxu0 0
        %952 = vmatpush2.bf16.msra.mxu0 0
        %953 = vmatprep.subr.bf16.mxu0 0
        %954 = vmatpush2.bf16.msra.mxu0 0
        %955 = vmatprep.mubr.bf16.mxu0 0
        %956 = vmatmul.mubr.bf16.gmra.mxu0 %v921
        %v957 = vpop.f32.mrf.mxu0
        %v958 = vadd.f32 %v891, %v957
        %v959 = vpop.f32.mrf.mxu0
        %v960 = vpop.f32.mrf.mxu0
        %v961 = vpop.f32.mrf.mxu0
        %962 = vdwg.mxu0
        %v967 = vunpack.c.l.b16 %v868
        %v968 = vunpack.c.l.b16 %v869
        %v969 = vunpack.c.l.b16 %v870
        %v970 = vunpack.c.l.b16 %v871
        %v971 = vpack.c.b16 %v968, %v967
        %v972 = vpack.c.b16 %v970, %v969
        %975 = vmatprep.subr.bf16.mxu0 0
        %976 = vmatpush1.bf16.msra.mxu0 0
        %977 = vmatprep.subr.bf16.mxu0 0
        %978 = vmatpush1.bf16.msra.mxu0 0
        %979 = vmatprep.subr.bf16.mxu0 0
        %980 = vmatpush1.bf16.msra.mxu0 0
        %981 = vmatprep.subr.bf16.mxu0 0
        %982 = vmatpush1.bf16.msra.mxu0 0
        %983 = vmatprep.subr.bf16.mxu0 0
        %984 = vmatpush1.bf16.msra.mxu0 0
        %985 = vmatprep.subr.bf16.mxu0 0
        %986 = vmatpush1.bf16.msra.mxu0 0
        %987 = vmatprep.subr.bf16.mxu0 0
        %988 = vmatpush1.bf16.msra.mxu0 %v972
        %989 = vmatprep.subr.bf16.mxu0 0
        %990 = vmatpush1.bf16.msra.mxu0 %v971
        %991 = vmatprep.subr.bf16.mxu0 0
        %992 = vmatpush2.bf16.msra.mxu0 0
        %993 = vmatprep.subr.bf16.mxu0 0
        %994 = vmatpush2.bf16.msra.mxu0 0
        %995 = vmatprep.subr.bf16.mxu0 0
        %996 = vmatpush2.bf16.msra.mxu0 0
        %997 = vmatprep.subr.bf16.mxu0 0
        %998 = vmatpush2.bf16.msra.mxu0 0
        %999 = vmatprep.subr.bf16.mxu0 0
        %1000 = vmatpush2.bf16.msra.mxu0 0
        %1001 = vmatprep.subr.bf16.mxu0 0
        %1002 = vmatpush2.bf16.msra.mxu0 0
        %1003 = vmatprep.subr.bf16.mxu0 0
        %1004 = vmatpush2.bf16.msra.mxu0 0
        %1005 = vmatprep.subr.bf16.mxu0 0
        %1006 = vmatpush2.bf16.msra.mxu0 0
        %1007 = vmatprep.mubr.bf16.mxu0 0
        %1008 = vmatmul.mubr.bf16.gmra.mxu0 %v921
        %v1009 = vpop.f32.mrf.mxu0
        %v1010 = vadd.f32 %v895, %v1009
        %v1011 = vpop.f32.mrf.mxu0
        %v1012 = vpop.f32.mrf.mxu0
        %v1013 = vpop.f32.mrf.mxu0
        %1014 = vdwg.mxu0
        %v1019 = vunpack.c.l.b16 %v872
        %v1020 = vunpack.c.l.b16 %v873
        %v1021 = vunpack.c.l.b16 %v874
        %v1022 = vunpack.c.l.b16 %v875
        %v1023 = vpack.c.b16 %v1020, %v1019
        %v1024 = vpack.c.b16 %v1022, %v1021
        %1027 = vmatprep.subr.bf16.mxu0 0
        %1028 = vmatpush1.bf16.msra.mxu0 0
        %1029 = vmatprep.subr.bf16.mxu0 0
        %1030 = vmatpush1.bf16.msra.mxu0 0
        %1031 = vmatprep.subr.bf16.mxu0 0
        %1032 = vmatpush1.bf16.msra.mxu0 0
        %1033 = vmatprep.subr.bf16.mxu0 0
        %1034 = vmatpush1.bf16.msra.mxu0 0
        %1035 = vmatprep.subr.bf16.mxu0 0
        %1036 = vmatpush1.bf16.msra.mxu0 0
        %1037 = vmatprep.subr.bf16.mxu0 0
        %1038 = vmatpush1.bf16.msra.mxu0 0
        %1039 = vmatprep.subr.bf16.mxu0 0
        %1040 = vmatpush1.bf16.msra.mxu0 %v1024
        %1041 = vmatprep.subr.bf16.mxu0 0
        %1042 = vmatpush1.bf16.msra.mxu0 %v1023
        %1043 = vmatprep.subr.bf16.mxu0 0
        %1044 = vmatpush2.bf16.msra.mxu0 0
        %1045 = vmatprep.subr.bf16.mxu0 0
        %1046 = vmatpush2.bf16.msra.mxu0 0
        %1047 = vmatprep.subr.bf16.mxu0 0
        %1048 = vmatpush2.bf16.msra.mxu0 0
        %1049 = vmatprep.subr.bf16.mxu0 0
        %1050 = vmatpush2.bf16.msra.mxu0 0
        %1051 = vmatprep.subr.bf16.mxu0 0
        %1052 = vmatpush2.bf16.msra.mxu0 0
        %1053 = vmatprep.subr.bf16.mxu0 0
        %1054 = vmatpush2.bf16.msra.mxu0 0
        %1055 = vmatprep.subr.bf16.mxu0 0
        %1056 = vmatpush2.bf16.msra.mxu0 0
        %1057 = vmatprep.subr.bf16.mxu0 0
        %1058 = vmatpush2.bf16.msra.mxu0 0
        %1059 = vmatprep.mubr.bf16.mxu0 0
        %1060 = vmatmul.mubr.bf16.gmra.mxu0 %v921
        %v1061 = vpop.f32.mrf.mxu0
        %v1062 = vadd.f32 %v899, %v1061
        %v1063 = vpop.f32.mrf.mxu0
        %v1064 = vpop.f32.mrf.mxu0
        %v1065 = vpop.f32.mrf.mxu0
        %1066 = vdwg.mxu0
        %v1071 = vunpack.c.l.b16 %v876
        %v1072 = vunpack.c.l.b16 %v877
        %v1073 = vunpack.c.l.b16 %v878
        %v1074 = vunpack.c.l.b16 %v879
        %v1075 = vpack.c.b16 %v1072, %v1071
        %v1076 = vpack.c.b16 %v1074, %v1073
        %1079 = vmatprep.subr.bf16.mxu0 0
        %1080 = vmatpush1.bf16.msra.mxu0 0
        %1081 = vmatprep.subr.bf16.mxu0 0
        %1082 = vmatpush1.bf16.msra.mxu0 0
        %1083 = vmatprep.subr.bf16.mxu0 0
        %1084 = vmatpush1.bf16.msra.mxu0 0
        %1085 = vmatprep.subr.bf16.mxu0 0
        %1086 = vmatpush1.bf16.msra.mxu0 0
        %1087 = vmatprep.subr.bf16.mxu0 0
        %1088 = vmatpush1.bf16.msra.mxu0 0
        %1089 = vmatprep.subr.bf16.mxu0 0
        %1090 = vmatpush1.bf16.msra.mxu0 0
        %1091 = vmatprep.subr.bf16.mxu0 0
        %1092 = vmatpush1.bf16.msra.mxu0 %v1076
        %1093 = vmatprep.subr.bf16.mxu0 0
        %1094 = vmatpush1.bf16.msra.mxu0 %v1075
        %1095 = vmatprep.subr.bf16.mxu0 0
        %1096 = vmatpush2.bf16.msra.mxu0 0
        %1097 = vmatprep.subr.bf16.mxu0 0
        %1098 = vmatpush2.bf16.msra.mxu0 0
        %1099 = vmatprep.subr.bf16.mxu0 0
        %1100 = vmatpush2.bf16.msra.mxu0 0
        %1101 = vmatprep.subr.bf16.mxu0 0
        %1102 = vmatpush2.bf16.msra.mxu0 0
        %1103 = vmatprep.subr.bf16.mxu0 0
        %1104 = vmatpush2.bf16.msra.mxu0 0
        %1105 = vmatprep.subr.bf16.mxu0 0
        %1106 = vmatpush2.bf16.msra.mxu0 0
        %1107 = vmatprep.subr.bf16.mxu0 0
        %1108 = vmatpush2.bf16.msra.mxu0 0
        %1109 = vmatprep.subr.bf16.mxu0 0
        %1110 = vmatpush2.bf16.msra.mxu0 0
        %1111 = vmatprep.mubr.bf16.mxu0 0
        %1112 = vmatmul.mubr.bf16.gmra.mxu0 %v921
        %v1113 = vpop.f32.mrf.mxu0
        %v1114 = vadd.f32 %v903, %v1113
        %v1115 = vpop.f32.mrf.mxu0
        %v1116 = vpop.f32.mrf.mxu0
        %v1117 = vpop.f32.mrf.mxu0
        %1118 = vdwg.mxu0
        %v1119 = vpack.c.bf16 %v860, %v860
        %v1120 = vpack.c.bf16 %v861, %v861
        %v1121 = vpack.c.bf16 %v862, %v862
        %v1122 = vpack.c.bf16 %v863, %v863
        %v1123 = vpack.c.bf16 %v958, %v958
        %v1124 = vpack.c.bf16 %v1010, %v1010
        %v1125 = vpack.c.bf16 %v1062, %v1062
        %v1126 = vpack.c.bf16 %v1114, %v1114
        %vm1127 = vcmask 64512
        %v1129 = vsel %vm1127, %v1119, 0
        %v1132 = vsel %vm1127, %v1123, 0
        %1134 = vmatprep.subr.bf16.mxu0 0
        %1135 = vmatpush1.bf16.xpose.msra.mxu0 0
        %1136 = vmatprep.subr.bf16.mxu0 0
        %1137 = vmatpush1.bf16.xpose.msra.mxu0 0
        %1138 = vmatprep.subr.bf16.mxu0 0
        %1139 = vmatpush1.bf16.xpose.msra.mxu0 0
        %1140 = vmatprep.subr.bf16.mxu0 0
        %1141 = vmatpush1.bf16.xpose.msra.mxu0 0
        %1142 = vmatprep.subr.bf16.mxu0 0
        %1143 = vmatpush1.bf16.xpose.msra.mxu0 0
        %1144 = vmatprep.subr.bf16.mxu0 0
        %1145 = vmatpush1.bf16.xpose.msra.mxu0 0
        %1146 = vmatprep.subr.bf16.mxu0 0
        %1147 = vmatpush1.bf16.xpose.msra.mxu0 0
        %1148 = vmatprep.subr.bf16.mxu0 0
        %1149 = vmatpush1.bf16.xpose.msra.mxu0 %v1132
        %1150 = vmatprep.subr.bf16.mxu0 0
        %1151 = vmatpush2.bf16.xpose.msra.mxu0 0
        %1152 = vmatprep.subr.bf16.mxu0 0
        %1153 = vmatpush2.bf16.xpose.msra.mxu0 0
        %1154 = vmatprep.subr.bf16.mxu0 0
        %1155 = vmatpush2.bf16.xpose.msra.mxu0 0
        %1156 = vmatprep.subr.bf16.mxu0 0
        %1157 = vmatpush2.bf16.xpose.msra.mxu0 0
        %1158 = vmatprep.subr.bf16.mxu0 0
        %1159 = vmatpush2.bf16.xpose.msra.mxu0 0
        %1160 = vmatprep.subr.bf16.mxu0 0
        %1161 = vmatpush2.bf16.xpose.msra.mxu0 0
        %1162 = vmatprep.subr.bf16.mxu0 0
        %1163 = vmatpush2.bf16.xpose.msra.mxu0 0
        %1164 = vmatprep.subr.bf16.mxu0 0
        %1165 = vmatpush2.bf16.xpose.msra.mxu0 0
        %1166 = vmatprep.mubr.bf16.mxu0 0
        %1167 = vmatmul.mubr.bf16.gmra.mxu0 %v1129
        %v1168 = vpop.f32.mrf.mxu0
        %v1169 = vadd.f32 0.0, %v1168
        %v1170 = vpop.f32.mrf.mxu0
        %v1171 = vpop.f32.mrf.mxu0
        %v1172 = vpop.f32.mrf.mxu0
        %1173 = vdwg.mxu0
        %v1175 = vsel %vm1127, %v1120, 0
        %v1178 = vsel %vm1127, %v1124, 0
        %1180 = vmatprep.subr.bf16.mxu0 0
        %1181 = vmatpush1.bf16.xpose.msra.mxu0 0
        %1182 = vmatprep.subr.bf16.mxu0 0
        %1183 = vmatpush1.bf16.xpose.msra.mxu0 0
        %1184 = vmatprep.subr.bf16.mxu0 0
        %1185 = vmatpush1.bf16.xpose.msra.mxu0 0
        %1186 = vmatprep.subr.bf16.mxu0 0
        %1187 = vmatpush1.bf16.xpose.msra.mxu0 0
        %1188 = vmatprep.subr.bf16.mxu0 0
        %1189 = vmatpush1.bf16.xpose.msra.mxu0 0
        %1190 = vmatprep.subr.bf16.mxu0 0
        %1191 = vmatpush1.bf16.xpose.msra.mxu0 0
        %1192 = vmatprep.subr.bf16.mxu0 0
        %1193 = vmatpush1.bf16.xpose.msra.mxu0 0
        %1194 = vmatprep.subr.bf16.mxu0 0
        %1195 = vmatpush1.bf16.xpose.msra.mxu0 %v1178
        %1196 = vmatprep.subr.bf16.mxu0 0
        %1197 = vmatpush2.bf16.xpose.msra.mxu0 0
        %1198 = vmatprep.subr.bf16.mxu0 0
        %1199 = vmatpush2.bf16.xpose.msra.mxu0 0
        %1200 = vmatprep.subr.bf16.mxu0 0
        %1201 = vmatpush2.bf16.xpose.msra.mxu0 0
        %1202 = vmatprep.subr.bf16.mxu0 0
        %1203 = vmatpush2.bf16.xpose.msra.mxu0 0
        %1204 = vmatprep.subr.bf16.mxu0 0
        %1205 = vmatpush2.bf16.xpose.msra.mxu0 0
        %1206 = vmatprep.subr.bf16.mxu0 0
        %1207 = vmatpush2.bf16.xpose.msra.mxu0 0
        %1208 = vmatprep.subr.bf16.mxu0 0
        %1209 = vmatpush2.bf16.xpose.msra.mxu0 0
        %1210 = vmatprep.subr.bf16.mxu0 0
        %1211 = vmatpush2.bf16.xpose.msra.mxu0 0
        %1212 = vmatprep.mubr.bf16.mxu0 0
        %1213 = vmatmul.mubr.bf16.gmra.mxu0 %v1175
        %v1214 = vpop.f32.mrf.mxu0
        %v1215 = vadd.f32 0.0, %v1214
        %v1216 = vpop.f32.mrf.mxu0
        %v1217 = vpop.f32.mrf.mxu0
        %v1218 = vpop.f32.mrf.mxu0
        %1219 = vdwg.mxu0
        %v1221 = vsel %vm1127, %v1121, 0
        %v1224 = vsel %vm1127, %v1125, 0
        %1226 = vmatprep.subr.bf16.mxu0 0
        %1227 = vmatpush1.bf16.xpose.msra.mxu0 0
        %1228 = vmatprep.subr.bf16.mxu0 0
        %1229 = vmatpush1.bf16.xpose.msra.mxu0 0
        %1230 = vmatprep.subr.bf16.mxu0 0
        %1231 = vmatpush1.bf16.xpose.msra.mxu0 0
        %1232 = vmatprep.subr.bf16.mxu0 0
        %1233 = vmatpush1.bf16.xpose.msra.mxu0 0
        %1234 = vmatprep.subr.bf16.mxu0 0
        %1235 = vmatpush1.bf16.xpose.msra.mxu0 0
        %1236 = vmatprep.subr.bf16.mxu0 0
        %1237 = vmatpush1.bf16.xpose.msra.mxu0 0
        %1238 = vmatprep.subr.bf16.mxu0 0
        %1239 = vmatpush1.bf16.xpose.msra.mxu0 0
        %1240 = vmatprep.subr.bf16.mxu0 0
        %1241 = vmatpush1.bf16.xpose.msra.mxu0 %v1224
        %1242 = vmatprep.subr.bf16.mxu0 0
        %1243 = vmatpush2.bf16.xpose.msra.mxu0 0
        %1244 = vmatprep.subr.bf16.mxu0 0
        %1245 = vmatpush2.bf16.xpose.msra.mxu0 0
        %1246 = vmatprep.subr.bf16.mxu0 0
        %1247 = vmatpush2.bf16.xpose.msra.mxu0 0
        %1248 = vmatprep.subr.bf16.mxu0 0
        %1249 = vmatpush2.bf16.xpose.msra.mxu0 0
        %1250 = vmatprep.subr.bf16.mxu0 0
        %1251 = vmatpush2.bf16.xpose.msra.mxu0 0
        %1252 = vmatprep.subr.bf16.mxu0 0
        %1253 = vmatpush2.bf16.xpose.msra.mxu0 0
        %1254 = vmatprep.subr.bf16.mxu0 0
        %1255 = vmatpush2.bf16.xpose.msra.mxu0 0
        %1256 = vmatprep.subr.bf16.mxu0 0
        %1257 = vmatpush2.bf16.xpose.msra.mxu0 0
        %1258 = vmatprep.mubr.bf16.mxu0 0
        %1259 = vmatmul.mubr.bf16.gmra.mxu0 %v1221
        %v1260 = vpop.f32.mrf.mxu0
        %v1261 = vadd.f32 0.0, %v1260
        %v1262 = vpop.f32.mrf.mxu0
        %v1263 = vpop.f32.mrf.mxu0
        %v1264 = vpop.f32.mrf.mxu0
        %1265 = vdwg.mxu0
        %v1267 = vsel %vm1127, %v1122, 0
        %v1270 = vsel %vm1127, %v1126, 0
        %1272 = vmatprep.subr.bf16.mxu0 0
        %1273 = vmatpush1.bf16.xpose.msra.mxu0 0
        %1274 = vmatprep.subr.bf16.mxu0 0
        %1275 = vmatpush1.bf16.xpose.msra.mxu0 0
        %1276 = vmatprep.subr.bf16.mxu0 0
        %1277 = vmatpush1.bf16.xpose.msra.mxu0 0
        %1278 = vmatprep.subr.bf16.mxu0 0
        %1279 = vmatpush1.bf16.xpose.msra.mxu0 0
        %1280 = vmatprep.subr.bf16.mxu0 0
        %1281 = vmatpush1.bf16.xpose.msra.mxu0 0
        %1282 = vmatprep.subr.bf16.mxu0 0
        %1283 = vmatpush1.bf16.xpose.msra.mxu0 0
        %1284 = vmatprep.subr.bf16.mxu0 0
        %1285 = vmatpush1.bf16.xpose.msra.mxu0 0
        %1286 = vmatprep.subr.bf16.mxu0 0
        %1287 = vmatpush1.bf16.xpose.msra.mxu0 %v1270
        %1288 = vmatprep.subr.bf16.mxu0 0
        %1289 = vmatpush2.bf16.xpose.msra.mxu0 0
        %1290 = vmatprep.subr.bf16.mxu0 0
        %1291 = vmatpush2.bf16.xpose.msra.mxu0 0
        %1292 = vmatprep.subr.bf16.mxu0 0
        %1293 = vmatpush2.bf16.xpose.msra.mxu0 0
        %1294 = vmatprep.subr.bf16.mxu0 0
        %1295 = vmatpush2.bf16.xpose.msra.mxu0 0
        %1296 = vmatprep.subr.bf16.mxu0 0
        %1297 = vmatpush2.bf16.xpose.msra.mxu0 0
        %1298 = vmatprep.subr.bf16.mxu0 0
        %1299 = vmatpush2.bf16.xpose.msra.mxu0 0
        %1300 = vmatprep.subr.bf16.mxu0 0
        %1301 = vmatpush2.bf16.xpose.msra.mxu0 0
        %1302 = vmatprep.subr.bf16.mxu0 0
        %1303 = vmatpush2.bf16.xpose.msra.mxu0 0
        %1304 = vmatprep.mubr.bf16.mxu0 0
        %1305 = vmatmul.mubr.bf16.gmra.mxu0 %v1267
        %v1306 = vpop.f32.mrf.mxu0
        %v1307 = vadd.f32 0.0, %v1306
        %v1308 = vpop.f32.mrf.mxu0
        %v1309 = vpop.f32.mrf.mxu0
        %v1310 = vpop.f32.mrf.mxu0
        %1311 = vdwg.mxu0
        %v1312 = vsel %vm1127, %v1169, -inf
        %1313 = vmax.xlane.f32.xlu0 %v1312
        %v1314 = vpop.xlane.xlu0 %1313
        %v1315 = vsel %vm1127, %v1215, -inf
        %1316 = vmax.xlane.f32.xlu0 %v1315
        %v1317 = vpop.xlane.xlu0 %1316
        %v1318 = vsel %vm1127, %v1261, -inf
        %1319 = vmax.xlane.f32.xlu0 %v1318
        %v1320 = vpop.xlane.xlu0 %1319
        %v1321 = vsel %vm1127, %v1307, -inf
        %1322 = vmax.xlane.f32.xlu0 %v1321
        %v1323 = vpop.xlane.xlu0 %1322
        %v1324 = vsub.f32 %v1169, %v1314
        %v1325 = vsub.f32 %v1215, %v1317
        %v1326 = vsub.f32 %v1261, %v1320
        %v1327 = vsub.f32 %v1307, %v1323
        %v1328 = vmul.f32 %v1324, 1.442695
        %v1329 = vpow.pop %v1328
        %v1330 = vmul.f32 %v1325, 1.442695
        %v1331 = vpow.pop %v1330
        %v1332 = vmul.f32 %v1326, 1.442695
        %v1333 = vpow.pop %v1332
        %v1334 = vmul.f32 %v1327, 1.442695
        %v1335 = vpow.pop %v1334
        %v1336 = vsel %vm1127, %v1329, 0.0
        %1337 = vadd.xlane.f32.xlu0 %v1336
        %v1338 = vpop.xlane.xlu0 %1337
        %v1339 = vsel %vm1127, %v1331, 0.0
        %1340 = vadd.xlane.f32.xlu0 %v1339
        %v1341 = vpop.xlane.xlu0 %1340
        %v1342 = vsel %vm1127, %v1333, 0.0
        %1343 = vadd.xlane.f32.xlu0 %v1342
        %v1344 = vpop.xlane.xlu0 %1343
        %v1345 = vsel %vm1127, %v1335, 0.0
        %1346 = vadd.xlane.f32.xlu0 %v1345
        %v1347 = vpop.xlane.xlu0 %1346
        %v1348 = vrcp.pop %v1338
        %v1349 = vrcp.pop %v1341
        %v1350 = vrcp.pop %v1344
        %v1351 = vrcp.pop %v1347
        %v1352 = vmul.f32 %v1329, %v1348
        %v1353 = vmul.f32 %v1331, %v1349
        %v1354 = vmul.f32 %v1333, %v1350
        %v1355 = vmul.f32 %v1335, %v1351
        %1356 = vst.msk [vmem:[%s587] sm:$0xff] %vm1127, %v1352
        %1357 = vst.msk [vmem:[%s587 + $0x8] sm:$0xff] %vm1127, %v1353
        %1358 = vst.msk [vmem:[%s587 + $0x10] sm:$0xff] %vm1127, %v1354
        %1359 = vst.msk [vmem:[%s587 + $0x18] sm:$0xff] %vm1127, %v1355
        %v1360 = vpack.c.bf16 %v1352, %v1352
        %v1361 = vpack.c.bf16 %v1353, %v1353
        %v1362 = vpack.c.bf16 %v1354, %v1354
        %v1363 = vpack.c.bf16 %v1355, %v1355
        %1365 = vrot.lane.b32.xlu0 %v1123, 120
        %v1366 = vpop.permute.xlu0 %1365
        %v1368 = vsel %vm1127, %v1360, 0
        %vm1370 = vcmask 1043456
        %v1372 = vsel %vm1370, %v1366, 0
        %1374 = vmatprep.subr.bf16.mxu0 0
        %1375 = vmatpush1.bf16.msra.mxu0 0
        %1376 = vmatprep.subr.bf16.mxu0 0
        %1377 = vmatpush1.bf16.msra.mxu0 0
        %1378 = vmatprep.subr.bf16.mxu0 0
        %1379 = vmatpush1.bf16.msra.mxu0 0
        %1380 = vmatprep.subr.bf16.mxu0 0
        %1381 = vmatpush1.bf16.msra.mxu0 0
        %1382 = vmatprep.subr.bf16.mxu0 0
        %1383 = vmatpush1.bf16.msra.mxu0 0
        %1384 = vmatprep.subr.bf16.mxu0 0
        %1385 = vmatpush1.bf16.msra.mxu0 0
        %1386 = vmatprep.subr.bf16.mxu0 0
        %1387 = vmatpush1.bf16.msra.mxu0 0
        %1388 = vmatprep.subr.bf16.mxu0 0
        %1389 = vmatpush1.bf16.msra.mxu0 %v1372
        %1390 = vmatprep.subr.bf16.mxu0 0
        %1391 = vmatpush2.bf16.msra.mxu0 0
        %1392 = vmatprep.subr.bf16.mxu0 0
        %1393 = vmatpush2.bf16.msra.mxu0 0
        %1394 = vmatprep.subr.bf16.mxu0 0
        %1395 = vmatpush2.bf16.msra.mxu0 0
        %1396 = vmatprep.subr.bf16.mxu0 0
        %1397 = vmatpush2.bf16.msra.mxu0 0
        %1398 = vmatprep.subr.bf16.mxu0 0
        %1399 = vmatpush2.bf16.msra.mxu0 0
        %1400 = vmatprep.subr.bf16.mxu0 0
        %1401 = vmatpush2.bf16.msra.mxu0 0
        %1402 = vmatprep.subr.bf16.mxu0 0
        %1403 = vmatpush2.bf16.msra.mxu0 0
        %1404 = vmatprep.subr.bf16.mxu0 0
        %1405 = vmatpush2.bf16.msra.mxu0 0
        %1406 = vmatprep.mubr.bf16.mxu0 0
        %1407 = vmatmul.mubr.bf16.gmra.mxu0 %v1368
        %v1408 = vpop.f32.mrf.mxu0
        %v1409 = vadd.f32 0.0, %v1408
        %v1410 = vpop.f32.mrf.mxu0
        %v1411 = vpop.f32.mrf.mxu0
        %v1412 = vpop.f32.mrf.mxu0
        %1413 = vdwg.mxu0
        %1415 = vrot.lane.b32.xlu0 %v1124, 120
        %v1416 = vpop.permute.xlu0 %1415
        %v1418 = vsel %vm1127, %v1361, 0
        %v1421 = vsel %vm1370, %v1416, 0
        %1423 = vmatprep.subr.bf16.mxu0 0
        %1424 = vmatpush1.bf16.msra.mxu0 0
        %1425 = vmatprep.subr.bf16.mxu0 0
        %1426 = vmatpush1.bf16.msra.mxu0 0
        %1427 = vmatprep.subr.bf16.mxu0 0
        %1428 = vmatpush1.bf16.msra.mxu0 0
        %1429 = vmatprep.subr.bf16.mxu0 0
        %1430 = vmatpush1.bf16.msra.mxu0 0
        %1431 = vmatprep.subr.bf16.mxu0 0
        %1432 = vmatpush1.bf16.msra.mxu0 0
        %1433 = vmatprep.subr.bf16.mxu0 0
        %1434 = vmatpush1.bf16.msra.mxu0 0
        %1435 = vmatprep.subr.bf16.mxu0 0
        %1436 = vmatpush1.bf16.msra.mxu0 0
        %1437 = vmatprep.subr.bf16.mxu0 0
        %1438 = vmatpush1.bf16.msra.mxu0 %v1421
        %1439 = vmatprep.subr.bf16.mxu0 0
        %1440 = vmatpush2.bf16.msra.mxu0 0
        %1441 = vmatprep.subr.bf16.mxu0 0
        %1442 = vmatpush2.bf16.msra.mxu0 0
        %1443 = vmatprep.subr.bf16.mxu0 0
        %1444 = vmatpush2.bf16.msra.mxu0 0
        %1445 = vmatprep.subr.bf16.mxu0 0
        %1446 = vmatpush2.bf16.msra.mxu0 0
        %1447 = vmatprep.subr.bf16.mxu0 0
        %1448 = vmatpush2.bf16.msra.mxu0 0
        %1449 = vmatprep.subr.bf16.mxu0 0
        %1450 = vmatpush2.bf16.msra.mxu0 0
        %1451 = vmatprep.subr.bf16.mxu0 0
        %1452 = vmatpush2.bf16.msra.mxu0 0
        %1453 = vmatprep.subr.bf16.mxu0 0
        %1454 = vmatpush2.bf16.msra.mxu0 0
        %1455 = vmatprep.mubr.bf16.mxu0 0
        %1456 = vmatmul.mubr.bf16.gmra.mxu0 %v1418
        %v1457 = vpop.f32.mrf.mxu0
        %v1458 = vadd.f32 0.0, %v1457
        %v1459 = vpop.f32.mrf.mxu0
        %v1460 = vpop.f32.mrf.mxu0
        %v1461 = vpop.f32.mrf.mxu0
        %1462 = vdwg.mxu0
        %1464 = vrot.lane.b32.xlu0 %v1125, 120
        %v1465 = vpop.permute.xlu0 %1464
        %v1467 = vsel %vm1127, %v1362, 0
        %v1470 = vsel %vm1370, %v1465, 0
        %1472 = vmatprep.subr.bf16.mxu0 0
        %1473 = vmatpush1.bf16.msra.mxu0 0
        %1474 = vmatprep.subr.bf16.mxu0 0
        %1475 = vmatpush1.bf16.msra.mxu0 0
        %1476 = vmatprep.subr.bf16.mxu0 0
        %1477 = vmatpush1.bf16.msra.mxu0 0
        %1478 = vmatprep.subr.bf16.mxu0 0
        %1479 = vmatpush1.bf16.msra.mxu0 0
        %1480 = vmatprep.subr.bf16.mxu0 0
        %1481 = vmatpush1.bf16.msra.mxu0 0
        %1482 = vmatprep.subr.bf16.mxu0 0
        %1483 = vmatpush1.bf16.msra.mxu0 0
        %1484 = vmatprep.subr.bf16.mxu0 0
        %1485 = vmatpush1.bf16.msra.mxu0 0
        %1486 = vmatprep.subr.bf16.mxu0 0
        %1487 = vmatpush1.bf16.msra.mxu0 %v1470
        %1488 = vmatprep.subr.bf16.mxu0 0
        %1489 = vmatpush2.bf16.msra.mxu0 0
        %1490 = vmatprep.subr.bf16.mxu0 0
        %1491 = vmatpush2.bf16.msra.mxu0 0
        %1492 = vmatprep.subr.bf16.mxu0 0
        %1493 = vmatpush2.bf16.msra.mxu0 0
        %1494 = vmatprep.subr.bf16.mxu0 0
        %1495 = vmatpush2.bf16.msra.mxu0 0
        %1496 = vmatprep.subr.bf16.mxu0 0
        %1497 = vmatpush2.bf16.msra.mxu0 0
        %1498 = vmatprep.subr.bf16.mxu0 0
        %1499 = vmatpush2.bf16.msra.mxu0 0
        %1500 = vmatprep.subr.bf16.mxu0 0
        %1501 = vmatpush2.bf16.msra.mxu0 0
        %1502 = vmatprep.subr.bf16.mxu0 0
        %1503 = vmatpush2.bf16.msra.mxu0 0
        %1504 = vmatprep.mubr.bf16.mxu0 0
        %1505 = vmatmul.mubr.bf16.gmra.mxu0 %v1467
        %v1506 = vpop.f32.mrf.mxu0
        %v1507 = vadd.f32 0.0, %v1506
        %v1508 = vpop.f32.mrf.mxu0
        %v1509 = vpop.f32.mrf.mxu0
        %v1510 = vpop.f32.mrf.mxu0
        %1511 = vdwg.mxu0
        %1513 = vrot.lane.b32.xlu0 %v1126, 120
        %v1514 = vpop.permute.xlu0 %1513
        %v1516 = vsel %vm1127, %v1363, 0
        %v1519 = vsel %vm1370, %v1514, 0
        %1521 = vmatprep.subr.bf16.mxu0 0
        %1522 = vmatpush1.bf16.msra.mxu0 0
        %1523 = vmatprep.subr.bf16.mxu0 0
        %1524 = vmatpush1.bf16.msra.mxu0 0
        %1525 = vmatprep.subr.bf16.mxu0 0
        %1526 = vmatpush1.bf16.msra.mxu0 0
        %1527 = vmatprep.subr.bf16.mxu0 0
        %1528 = vmatpush1.bf16.msra.mxu0 0
        %1529 = vmatprep.subr.bf16.mxu0 0
        %1530 = vmatpush1.bf16.msra.mxu0 0
        %1531 = vmatprep.subr.bf16.mxu0 0
        %1532 = vmatpush1.bf16.msra.mxu0 0
        %1533 = vmatprep.subr.bf16.mxu0 0
        %1534 = vmatpush1.bf16.msra.mxu0 0
        %1535 = vmatprep.subr.bf16.mxu0 0
        %1536 = vmatpush1.bf16.msra.mxu0 %v1519
        %1537 = vmatprep.subr.bf16.mxu0 0
        %1538 = vmatpush2.bf16.msra.mxu0 0
        %1539 = vmatprep.subr.bf16.mxu0 0
        %1540 = vmatpush2.bf16.msra.mxu0 0
        %1541 = vmatprep.subr.bf16.mxu0 0
        %1542 = vmatpush2.bf16.msra.mxu0 0
        %1543 = vmatprep.subr.bf16.mxu0 0
        %1544 = vmatpush2.bf16.msra.mxu0 0
        %1545 = vmatprep.subr.bf16.mxu0 0
        %1546 = vmatpush2.bf16.msra.mxu0 0
        %1547 = vmatprep.subr.bf16.mxu0 0
        %1548 = vmatpush2.bf16.msra.mxu0 0
        %1549 = vmatprep.subr.bf16.mxu0 0
        %1550 = vmatpush2.bf16.msra.mxu0 0
        %1551 = vmatprep.subr.bf16.mxu0 0
        %1552 = vmatpush2.bf16.msra.mxu0 0
        %1553 = vmatprep.mubr.bf16.mxu0 0
        %1554 = vmatmul.mubr.bf16.gmra.mxu0 %v1516
        %v1555 = vpop.f32.mrf.mxu0
        %v1556 = vadd.f32 0.0, %v1555
        %v1557 = vpop.f32.mrf.mxu0
        %v1558 = vpop.f32.mrf.mxu0
        %v1559 = vpop.f32.mrf.mxu0
        %1560 = vdwg.mxu0
        %v1561 = vpack.c.bf16 %v1409, %v1409
        %v1562 = vpack.c.bf16 %v1458, %v1458
        %v1563 = vpack.c.bf16 %v1507, %v1507
        %v1564 = vpack.c.bf16 %v1556, %v1556
        %v1565 = vld [vmem:[%s6] sm:$0xf]
        %v1566 = vld [vmem:[%s6 + $0x4] sm:$0xf]
        %v1567 = vld [vmem:[%s6 + $0x8] sm:$0xf]
        %v1568 = vld [vmem:[%s6 + $0xc] sm:$0xf]
        %v1570 = vsel %vm1127, %v1561, 0
        %v1573 = vsel %vm1370, %v1565, 0
        %1575 = vmatprep.subr.bf16.mxu0 0
        %1576 = vmatpush1.bf16.msra.mxu0 0
        %1577 = vmatprep.subr.bf16.mxu0 0
        %1578 = vmatpush1.bf16.msra.mxu0 0
        %1579 = vmatprep.subr.bf16.mxu0 0
        %1580 = vmatpush1.bf16.msra.mxu0 0
        %1581 = vmatprep.subr.bf16.mxu0 0
        %1582 = vmatpush1.bf16.msra.mxu0 0
        %1583 = vmatprep.subr.bf16.mxu0 0
        %1584 = vmatpush1.bf16.msra.mxu0 0
        %1585 = vmatprep.subr.bf16.mxu0 0
        %1586 = vmatpush1.bf16.msra.mxu0 0
        %1587 = vmatprep.subr.bf16.mxu0 0
        %1588 = vmatpush1.bf16.msra.mxu0 0
        %1589 = vmatprep.subr.bf16.mxu0 0
        %1590 = vmatpush1.bf16.msra.mxu0 %v1573
        %1591 = vmatprep.subr.bf16.mxu0 0
        %1592 = vmatpush2.bf16.msra.mxu0 0
        %1593 = vmatprep.subr.bf16.mxu0 0
        %1594 = vmatpush2.bf16.msra.mxu0 0
        %1595 = vmatprep.subr.bf16.mxu0 0
        %1596 = vmatpush2.bf16.msra.mxu0 0
        %1597 = vmatprep.subr.bf16.mxu0 0
        %1598 = vmatpush2.bf16.msra.mxu0 0
        %1599 = vmatprep.subr.bf16.mxu0 0
        %1600 = vmatpush2.bf16.msra.mxu0 0
        %1601 = vmatprep.subr.bf16.mxu0 0
        %1602 = vmatpush2.bf16.msra.mxu0 0
        %1603 = vmatprep.subr.bf16.mxu0 0
        %1604 = vmatpush2.bf16.msra.mxu0 0
        %1605 = vmatprep.subr.bf16.mxu0 0
        %1606 = vmatpush2.bf16.msra.mxu0 0
        %1607 = vmatprep.mubr.bf16.mxu0 0
        %1608 = vmatmul.mubr.bf16.gmra.mxu0 %v1570
        %v1609 = vpop.f32.mrf.mxu0
        %v1610 = vadd.f32 0.0, %v1609
        %v1611 = vpop.f32.mrf.mxu0
        %v1612 = vpop.f32.mrf.mxu0
        %v1613 = vpop.f32.mrf.mxu0
        %1614 = vdwg.mxu0
        %v1616 = vsel %vm1127, %v1562, 0
        %v1619 = vsel %vm1370, %v1566, 0
        %1621 = vmatprep.subr.bf16.mxu0 0
        %1622 = vmatpush1.bf16.msra.mxu0 0
        %1623 = vmatprep.subr.bf16.mxu0 0
        %1624 = vmatpush1.bf16.msra.mxu0 0
        %1625 = vmatprep.subr.bf16.mxu0 0
        %1626 = vmatpush1.bf16.msra.mxu0 0
        %1627 = vmatprep.subr.bf16.mxu0 0
        %1628 = vmatpush1.bf16.msra.mxu0 0
        %1629 = vmatprep.subr.bf16.mxu0 0
        %1630 = vmatpush1.bf16.msra.mxu0 0
        %1631 = vmatprep.subr.bf16.mxu0 0
        %1632 = vmatpush1.bf16.msra.mxu0 0
        %1633 = vmatprep.subr.bf16.mxu0 0
        %1634 = vmatpush1.bf16.msra.mxu0 0
        %1635 = vmatprep.subr.bf16.mxu0 0
        %1636 = vmatpush1.bf16.msra.mxu0 %v1619
        %1637 = vmatprep.subr.bf16.mxu0 0
        %1638 = vmatpush2.bf16.msra.mxu0 0
        %1639 = vmatprep.subr.bf16.mxu0 0
        %1640 = vmatpush2.bf16.msra.mxu0 0
        %1641 = vmatprep.subr.bf16.mxu0 0
        %1642 = vmatpush2.bf16.msra.mxu0 0
        %1643 = vmatprep.subr.bf16.mxu0 0
        %1644 = vmatpush2.bf16.msra.mxu0 0
        %1645 = vmatprep.subr.bf16.mxu0 0
        %1646 = vmatpush2.bf16.msra.mxu0 0
        %1647 = vmatprep.subr.bf16.mxu0 0
        %1648 = vmatpush2.bf16.msra.mxu0 0
        %1649 = vmatprep.subr.bf16.mxu0 0
        %1650 = vmatpush2.bf16.msra.mxu0 0
        %1651 = vmatprep.subr.bf16.mxu0 0
        %1652 = vmatpush2.bf16.msra.mxu0 0
        %1653 = vmatprep.mubr.bf16.mxu0 0
        %1654 = vmatmul.mubr.bf16.gmra.mxu0 %v1616
        %v1655 = vpop.f32.mrf.mxu0
        %v1656 = vadd.f32 0.0, %v1655
        %v1657 = vpop.f32.mrf.mxu0
        %v1658 = vpop.f32.mrf.mxu0
        %v1659 = vpop.f32.mrf.mxu0
        %1660 = vdwg.mxu0
        %v1662 = vsel %vm1127, %v1563, 0
        %v1665 = vsel %vm1370, %v1567, 0
        %1667 = vmatprep.subr.bf16.mxu0 0
        %1668 = vmatpush1.bf16.msra.mxu0 0
        %1669 = vmatprep.subr.bf16.mxu0 0
        %1670 = vmatpush1.bf16.msra.mxu0 0
        %1671 = vmatprep.subr.bf16.mxu0 0
        %1672 = vmatpush1.bf16.msra.mxu0 0
        %1673 = vmatprep.subr.bf16.mxu0 0
        %1674 = vmatpush1.bf16.msra.mxu0 0
        %1675 = vmatprep.subr.bf16.mxu0 0
        %1676 = vmatpush1.bf16.msra.mxu0 0
        %1677 = vmatprep.subr.bf16.mxu0 0
        %1678 = vmatpush1.bf16.msra.mxu0 0
        %1679 = vmatprep.subr.bf16.mxu0 0
        %1680 = vmatpush1.bf16.msra.mxu0 0
        %1681 = vmatprep.subr.bf16.mxu0 0
        %1682 = vmatpush1.bf16.msra.mxu0 %v1665
        %1683 = vmatprep.subr.bf16.mxu0 0
        %1684 = vmatpush2.bf16.msra.mxu0 0
        %1685 = vmatprep.subr.bf16.mxu0 0
        %1686 = vmatpush2.bf16.msra.mxu0 0
        %1687 = vmatprep.subr.bf16.mxu0 0
        %1688 = vmatpush2.bf16.msra.mxu0 0
        %1689 = vmatprep.subr.bf16.mxu0 0
        %1690 = vmatpush2.bf16.msra.mxu0 0
        %1691 = vmatprep.subr.bf16.mxu0 0
        %1692 = vmatpush2.bf16.msra.mxu0 0
        %1693 = vmatprep.subr.bf16.mxu0 0
        %1694 = vmatpush2.bf16.msra.mxu0 0
        %1695 = vmatprep.subr.bf16.mxu0 0
        %1696 = vmatpush2.bf16.msra.mxu0 0
        %1697 = vmatprep.subr.bf16.mxu0 0
        %1698 = vmatpush2.bf16.msra.mxu0 0
        %1699 = vmatprep.mubr.bf16.mxu0 0
        %1700 = vmatmul.mubr.bf16.gmra.mxu0 %v1662
        %v1701 = vpop.f32.mrf.mxu0
        %v1702 = vadd.f32 0.0, %v1701
        %v1703 = vpop.f32.mrf.mxu0
        %v1704 = vpop.f32.mrf.mxu0
        %v1705 = vpop.f32.mrf.mxu0
        %1706 = vdwg.mxu0
        %v1708 = vsel %vm1127, %v1564, 0
        %v1711 = vsel %vm1370, %v1568, 0
        %1713 = vmatprep.subr.bf16.mxu0 0
        %1714 = vmatpush1.bf16.msra.mxu0 0
        %1715 = vmatprep.subr.bf16.mxu0 0
        %1716 = vmatpush1.bf16.msra.mxu0 0
        %1717 = vmatprep.subr.bf16.mxu0 0
        %1718 = vmatpush1.bf16.msra.mxu0 0
        %1719 = vmatprep.subr.bf16.mxu0 0
        %1720 = vmatpush1.bf16.msra.mxu0 0
        %1721 = vmatprep.subr.bf16.mxu0 0
        %1722 = vmatpush1.bf16.msra.mxu0 0
        %1723 = vmatprep.subr.bf16.mxu0 0
        %1724 = vmatpush1.bf16.msra.mxu0 0
        %1725 = vmatprep.subr.bf16.mxu0 0
        %1726 = vmatpush1.bf16.msra.mxu0 0
        %1727 = vmatprep.subr.bf16.mxu0 0
        %1728 = vmatpush1.bf16.msra.mxu0 %v1711
        %1729 = vmatprep.subr.bf16.mxu0 0
        %1730 = vmatpush2.bf16.msra.mxu0 0
        %1731 = vmatprep.subr.bf16.mxu0 0
        %1732 = vmatpush2.bf16.msra.mxu0 0
        %1733 = vmatprep.subr.bf16.mxu0 0
        %1734 = vmatpush2.bf16.msra.mxu0 0
        %1735 = vmatprep.subr.bf16.mxu0 0
        %1736 = vmatpush2.bf16.msra.mxu0 0
        %1737 = vmatprep.subr.bf16.mxu0 0
        %1738 = vmatpush2.bf16.msra.mxu0 0
        %1739 = vmatprep.subr.bf16.mxu0 0
        %1740 = vmatpush2.bf16.msra.mxu0 0
        %1741 = vmatprep.subr.bf16.mxu0 0
        %1742 = vmatpush2.bf16.msra.mxu0 0
        %1743 = vmatprep.subr.bf16.mxu0 0
        %1744 = vmatpush2.bf16.msra.mxu0 0
        %1745 = vmatprep.mubr.bf16.mxu0 0
        %1746 = vmatmul.mubr.bf16.gmra.mxu0 %v1708
        %v1747 = vpop.f32.mrf.mxu0
        %v1748 = vadd.f32 0.0, %v1747
        %v1749 = vpop.f32.mrf.mxu0
        %v1750 = vpop.f32.mrf.mxu0
        %v1751 = vpop.f32.mrf.mxu0
        %1752 = vdwg.mxu0
        %v1753 = vsel %vm660, %v1610, 0.0
        %v1754 = vsel %vm660, %v1656, 0.0
        %v1755 = vadd.f32 %v1753, %v1754
        %v1756 = vsel %vm660, %v1702, 0.0
        %v1757 = vadd.f32 %v1755, %v1756
        %v1758 = vsel %vm660, %v1748, 0.0
        %v1759 = vadd.f32 %v1757, %v1758
        %v1760 = vld [vmem:[%s7] sm:$0x1]
        %v1762 = vlaneseq
        %v1763 = vshrl.u32 %v1762, 7
        %v1764 = vsub.s32 0, %v1763
        %v1765 = vrot.slane %v1760, %v1764
        %v1767 = vadd.f32 %v1759, %v1765
        %v1768 = vadd.f32 %v600, %v1767
        %v1769 = vld [vmem:[%s8] sm:$0x1]
        %v1770 = vld [vmem:[%s9] sm:$0x1]
        %v1771 = vsel %vm660, %v1768, 0.0
        %1772 = vadd.xlane.f32.xlu0 %v1771
        %v1773 = vpop.xlane.xlu0 %1772
        %v1774 = vrcp.pop 32.0
        %v1775 = vmul.f32 %v1773, %v1774
        %v1776 = vsub.f32 %v1768, %v1775
        %v1777 = vmul.f32 %v1776, %v1776
        %v1778 = vsel %vm660, %v1777, 0.0
        %1779 = vadd.xlane.f32.xlu0 %v1778
        %v1780 = vpop.xlane.xlu0 %1779
        %v1781 = vmul.f32 %v1780, %v1774
        %v1782 = vadd.f32 %v1781, 1e-05
        %v1783 = vrsqrt.pop %v1782
        %v1784 = vmul.f32 %v1776, %v1783
        %v1786 = vlaneseq
        %v1787 = vshrl.u32 %v1786, 7
        %v1788 = vsub.s32 0, %v1787
        %v1789 = vrot.slane %v1769, %v1788
        %v1791 = vmul.f32 %v1784, %v1789
        %v1793 = vlaneseq
        %v1794 = vshrl.u32 %v1793, 7
        %v1795 = vsub.s32 0, %v1794
        %v1796 = vrot.slane %v1770, %v1795
        %v1798 = vadd.f32 %v1791, %v1796
        %v1799 = vpack.c.bf16 %v1798, %v1798
        %v1800 = vld [vmem:[%s10] sm:$0xf]
        %v1801 = vld [vmem:[%s10 + $0x4] sm:$0xf]
        %v1802 = vld [vmem:[%s10 + $0x8] sm:$0xf]
        %v1803 = vld [vmem:[%s10 + $0xc] sm:$0xf]
        %v1804 = vld [vmem:[%s11] sm:$0x1]
        %v1806 = vlaneseq
        %v1807 = vshrl.u32 %v1806, 7
        %v1808 = vsub.s32 0, %v1807
        %v1809 = vrot.slane %v1804, %v1808
        %v1815 = vunpack.c.l.b16 %v1800
        %v1816 = vunpack.c.l.b16 %v1801
        %v1817 = vunpack.c.l.b16 %v1802
        %v1818 = vunpack.c.l.b16 %v1803
        %v1819 = vpack.c.b16 %v1816, %v1815
        %v1820 = vpack.c.b16 %v1818, %v1817
        %v1824 = vsel %vm660, %v1799, 0
        %1826 = vmatprep.subr.bf16.mxu0 0
        %1827 = vmatpush1.bf16.msra.mxu0 0
        %1828 = vmatprep.subr.bf16.mxu0 0
        %1829 = vmatpush1.bf16.msra.mxu0 0
        %1830 = vmatprep.subr.bf16.mxu0 0
        %1831 = vmatpush1.bf16.msra.mxu0 0
        %1832 = vmatprep.subr.bf16.mxu0 0
        %1833 = vmatpush1.bf16.msra.mxu0 0
        %1834 = vmatprep.subr.bf16.mxu0 0
        %1835 = vmatpush1.bf16.msra.mxu0 0
        %1836 = vmatprep.subr.bf16.mxu0 0
        %1837 = vmatpush1.bf16.msra.mxu0 0
        %1838 = vmatprep.subr.bf16.mxu0 0
        %1839 = vmatpush1.bf16.msra.mxu0 %v1820
        %1840 = vmatprep.subr.bf16.mxu0 0
        %1841 = vmatpush1.bf16.msra.mxu0 %v1819
        %1842 = vmatprep.subr.bf16.mxu0 0
        %1843 = vmatpush2.bf16.msra.mxu0 0
        %1844 = vmatprep.subr.bf16.mxu0 0
        %1845 = vmatpush2.bf16.msra.mxu0 0
        %1846 = vmatprep.subr.bf16.mxu0 0
        %1847 = vmatpush2.bf16.msra.mxu0 0
        %1848 = vmatprep.subr.bf16.mxu0 0
        %1849 = vmatpush2.bf16.msra.mxu0 0
        %1850 = vmatprep.subr.bf16.mxu0 0
        %1851 = vmatpush2.bf16.msra.mxu0 0
        %1852 = vmatprep.subr.bf16.mxu0 0
        %1853 = vmatpush2.bf16.msra.mxu0 0
        %1854 = vmatprep.subr.bf16.mxu0 0
        %1855 = vmatpush2.bf16.msra.mxu0 0
        %1856 = vmatprep.subr.bf16.mxu0 0
        %1857 = vmatpush2.bf16.msra.mxu0 0
        %1858 = vmatprep.mubr.bf16.mxu0 0
        %1859 = vmatmul.mubr.bf16.gmra.mxu0 %v1824
        %v1860 = vpop.f32.mrf.mxu0
        %v1861 = vadd.f32 %v1809, %v1860
        %v1862 = vpop.f32.mrf.mxu0
        %v1863 = vpop.f32.mrf.mxu0
        %v1864 = vpop.f32.mrf.mxu0
        %1865 = vdwg.mxu0
        %v1866 = vmax.f32 %v1861, 0.0
        %v1867 = vpack.c.bf16 %v1866, %v1866
        %v1868 = vld [vmem:[%s12] sm:$0xf]
        %v1869 = vld [vmem:[%s12 + $0x4] sm:$0xf]
        %v1870 = vld [vmem:[%s12 + $0x8] sm:$0xf]
        %v1871 = vld [vmem:[%s12 + $0xc] sm:$0xf]
        %v1872 = vld [vmem:[%s12 + $0x10] sm:$0xf]
        %v1873 = vld [vmem:[%s12 + $0x14] sm:$0xf]
        %v1874 = vld [vmem:[%s12 + $0x18] sm:$0xf]
        %v1875 = vld [vmem:[%s12 + $0x1c] sm:$0xf]
        %v1876 = vld [vmem:[%s13] sm:$0x1]
        %v1878 = vlaneseq
        %v1879 = vshrl.u32 %v1878, 7
        %v1880 = vsub.s32 0, %v1879
        %v1881 = vrot.slane %v1876, %v1880
        %v1891 = vunpack.c.l.b16 %v1868
        %v1892 = vunpack.c.l.b16 %v1869
        %v1893 = vunpack.c.l.b16 %v1870
        %v1894 = vunpack.c.l.b16 %v1871
        %v1895 = vunpack.c.l.b16 %v1872
        %v1896 = vunpack.c.l.b16 %v1873
        %v1897 = vunpack.c.l.b16 %v1874
        %v1898 = vunpack.c.l.b16 %v1875
        %v1899 = vpack.c.b16 %v1892, %v1891
        %v1900 = vpack.c.b16 %v1894, %v1893
        %v1901 = vpack.c.b16 %v1896, %v1895
        %v1902 = vpack.c.b16 %v1898, %v1897
        %vm1907 = vcmask 523264
        %v1909 = vsel %vm1907, %v1867, 0
        %1911 = vmatprep.subr.bf16.mxu0 0
        %1912 = vmatpush1.bf16.msra.mxu0 0
        %1913 = vmatprep.subr.bf16.mxu0 0
        %1914 = vmatpush1.bf16.msra.mxu0 0
        %1915 = vmatprep.subr.bf16.mxu0 0
        %1916 = vmatpush1.bf16.msra.mxu0 0
        %1917 = vmatprep.subr.bf16.mxu0 0
        %1918 = vmatpush1.bf16.msra.mxu0 0
        %1919 = vmatprep.subr.bf16.mxu0 0
        %1920 = vmatpush1.bf16.msra.mxu0 %v1902
        %1921 = vmatprep.subr.bf16.mxu0 0
        %1922 = vmatpush1.bf16.msra.mxu0 %v1901
        %1923 = vmatprep.subr.bf16.mxu0 0
        %1924 = vmatpush1.bf16.msra.mxu0 %v1900
        %1925 = vmatprep.subr.bf16.mxu0 0
        %1926 = vmatpush1.bf16.msra.mxu0 %v1899
        %1927 = vmatprep.subr.bf16.mxu0 0
        %1928 = vmatpush2.bf16.msra.mxu0 0
        %1929 = vmatprep.subr.bf16.mxu0 0
        %1930 = vmatpush2.bf16.msra.mxu0 0
        %1931 = vmatprep.subr.bf16.mxu0 0
        %1932 = vmatpush2.bf16.msra.mxu0 0
        %1933 = vmatprep.subr.bf16.mxu0 0
        %1934 = vmatpush2.bf16.msra.mxu0 0
        %1935 = vmatprep.subr.bf16.mxu0 0
        %1936 = vmatpush2.bf16.msra.mxu0 0
        %1937 = vmatprep.subr.bf16.mxu0 0
        %1938 = vmatpush2.bf16.msra.mxu0 0
        %1939 = vmatprep.subr.bf16.mxu0 0
        %1940 = vmatpush2.bf16.msra.mxu0 0
        %1941 = vmatprep.subr.bf16.mxu0 0
        %1942 = vmatpush2.bf16.msra.mxu0 0
        %1943 = vmatprep.mubr.bf16.mxu0 0
        %1944 = vmatmul.mubr.bf16.gmra.mxu0 %v1909
        %v1945 = vpop.f32.mrf.mxu0
        %v1946 = vadd.f32 %v1881, %v1945
        %v1947 = vpop.f32.mrf.mxu0
        %v1948 = vpop.f32.mrf.mxu0
        %v1949 = vpop.f32.mrf.mxu0
        %1950 = vdwg.mxu0
        %v1951 = vadd.f32 %v1798, %v1946
        %v1952 = vld [vmem:[%s14] sm:$0x1]
        %v1953 = vld [vmem:[%s15] sm:$0x1]
        %v1954 = vsel %vm660, %v1951, 0.0
        %1955 = vadd.xlane.f32.xlu0 %v1954
        %v1956 = vpop.xlane.xlu0 %1955
        %v1957 = vmul.f32 %v1956, %v1774
        %v1958 = vsub.f32 %v1951, %v1957
        %v1959 = vmul.f32 %v1958, %v1958
        %v1960 = vsel %vm660, %v1959, 0.0
        %1961 = vadd.xlane.f32.xlu0 %v1960
        %v1962 = vpop.xlane.xlu0 %1961
        %v1963 = vmul.f32 %v1962, %v1774
        %v1964 = vadd.f32 %v1963, 1e-05
        %v1965 = vrsqrt.pop %v1964
        %v1966 = vmul.f32 %v1958, %v1965
        %v1968 = vlaneseq
        %v1969 = vshrl.u32 %v1968, 7
        %v1970 = vsub.s32 0, %v1969
        %v1971 = vrot.slane %v1952, %v1970
        %v1973 = vmul.f32 %v1966, %v1971
        %v1975 = vlaneseq
        %v1976 = vshrl.u32 %v1975, 7
        %v1977 = vsub.s32 0, %v1976
        %v1978 = vrot.slane %v1953, %v1977
        %v1980 = vadd.f32 %v1973, %v1978
        %1981 = vst.msk [vmem:[%s580] sm:$0xff] %vm660, %v1980
        %s1982 = sand.u32 %s405, 1
        %s1983 = scalar_lea.sflag [#allocation3], %s1982
        %s1984 = sand.u32 %s405, 1
        %s1985 = smul.addr %s1984, 8
        %s1986 = scalar_lea.vmem [#allocation2], %s1985
        %s1987 = sand.u32 %s433, 1
        %s1988 = scalar_lea.sflag [#allocation5], %s1987
        %s1989 = sand.u32 %s433, 1
        %s1990 = smul.addr %s1989, 32
        %s1991 = scalar_lea.vmem [#allocation4], %s1990
        // Predicated region
        $region85: #{tpu_custom_call.1} parent=83 // pred_check
          %p1992 = pneg %p415
        $region86: #{tpu_custom_call.1} parent=83 // pred_check_branch
          %1994 = sbr.rel (%p1992) target = $region88
        $region87: #{tpu_custom_call.1} parent=83 // pred_region
          %s1996 = ssub.s32 128, 128
          %1997 = vsyncadd %s1983, %s1996
          %s1998 = sadd.s32 %s40, %s39
          %s1999 = smul.addr %s1998, 128
          %s2000 = scalar_lea.hbm %s16, %s1999
          %s2002 = sshll.u32 %s1986, 4
          %s2003 = int_to_ptr.vmem [resolvable:$true] %s2002
          %2005 = dma.vmem_to_hbm [thread:$0]  %s2003, 128, %s2000, %s1983
        $region88: #{tpu_custom_call.1} parent=83 // pred_fallthru
          _
        // Predicated region
        $region89: #{tpu_custom_call.1} parent=83 // pred_check
          %p2006 = pneg %p443
        $region90: #{tpu_custom_call.1} parent=83 // pred_check_branch
          %2008 = sbr.rel (%p2006) target = $region92
        $region91: #{tpu_custom_call.1} parent=83 // pred_region
          %s2010 = ssub.s32 512, 512
          %2011 = vsyncadd %s1988, %s2010
          %s2012 = smul.addr %s39, 4
          %s2013 = sadd.s32 %s40, %s2012
          %s2014 = smul.addr %s2013, 128
          %s2015 = scalar_lea.hbm %s17, %s2014
          %s2016 = sshll.u32 %s1991, 4
          %s2017 = int_to_ptr.vmem [resolvable:$true] %s2016
          %2022 = dma.vmem_to_hbm [thread:$0]  %s2017, 512, %s2015, %s1988, 128, 128, 8
        $region92: #{tpu_custom_call.1} parent=83 // pred_fallthru
          _
      $region84: #{tpu_custom_call.1} parent=5 // pred_fallthru
        _
      %p2023 = scmp.le.s32.totalorder 2, %s30
      // Predicated region
      $region93: #{tpu_custom_call.1} parent=5 // pred_check
        %p2024 = pneg %p2023
      $region94: #{tpu_custom_call.1} parent=5 // pred_check_branch
        %2026 = sbr.rel (%p2024) target = $region96
      $region95: #{tpu_custom_call.1} parent=5 // pred_region
        %s2027 = ssub.s32 %s30, 2
        // Predicated region
        $region97: #{tpu_custom_call.1} parent=95 // pred_check
          %p2028 = pneg %p421
        $region98: #{tpu_custom_call.1} parent=95 // pred_check_branch
          %2030 = sbr.rel (%p2028) target = $region100
        $region99: #{tpu_custom_call.1} parent=95 // pred_region
          %s2031 = sand.u32 %s406, 1
          %s2032 = scalar_lea.sflag [#allocation3], %s2031
          %s2033 = sand.u32 %s406, 1
          %s2034 = smul.addr %s2033, 8
          %s2035 = scalar_lea.vmem [#allocation2], %s2034
          %2036 = dma.done %s2032, 128
        $region100: #{tpu_custom_call.1} parent=95 // pred_fallthru
          _
        // Predicated region
        $region101: #{tpu_custom_call.1} parent=95 // pred_check
          %p2037 = pneg %p449
        $region102: #{tpu_custom_call.1} parent=95 // pred_check_branch
          %2039 = sbr.rel (%p2037) target = $region104
        $region103: #{tpu_custom_call.1} parent=95 // pred_region
          %s2040 = sand.u32 %s434, 1
          %s2041 = scalar_lea.sflag [#allocation5], %s2040
          %s2042 = sand.u32 %s434, 1
          %s2043 = smul.addr %s2042, 32
          %s2044 = scalar_lea.vmem [#allocation4], %s2043
          %2045 = dma.done %s2041, 512
        $region104: #{tpu_custom_call.1} parent=95 // pred_fallthru
          _
      $region96: #{tpu_custom_call.1} parent=5 // pred_fallthru
        _
    $region6: #{tpu_custom_call.1} parent=1 // loop_footer
      %s34 = sadd.s32 1, %s30
    $region7: #{tpu_custom_call.1} parent=1 // loop_footer_branch
      %29 = sbr.rel target = $region3
    $region8: #{tpu_custom_call.1} parent=1 // loop_exit
      _
    %2046 = vsyncpa [#allocation3], 1
    %s2047 = scalar_lea.sflag [#allocation3], 1
    %2048 = vsyncpa %s2047, 1
    %2049 = vsyncpa [#allocation5], 1
    %s2050 = scalar_lea.sflag [#allocation5], 1
    %2051 = vsyncpa %s2050, 1

</llo_original>
